<compile_context>
chip_gen: v7x
topology: tpu7x:2x2x1
jax: 0.10.0
libtpu: 0.0.40
codegen_flags: <defaults>
</compile_context>

<pallas_src>
import math

import jax
import jax.numpy as jnp
from jax import lax
from jax.experimental import pallas as pl
from jax.experimental.pallas import tpu as pltpu


# ---------------------------------------------------------------------------
# Kernel factory: one grid step = Bb batch elements, everything VMEM resident.
# ---------------------------------------------------------------------------
def _make_encoder_kernel(H, Bb, S, D, Dh, F):
    def kernel(
        vlens_ref,            # SMEM (B,)     int32 (scalar prefetch)
        x_ref,                # VMEM (Bb,S,D) f32
        wqkvT_ref,            # VMEM (D,3D)   bf16  [Wq*scale | Wk | Wv]^T
        woT_ref,              # VMEM (D,D)    bf16
        g1_ref, be1_ref,      # VMEM (1,D)    f32
        w1T_ref, b1_ref,      # VMEM (D,F) bf16, (1,F) f32
        w2T_ref, b2_ref,      # VMEM (F,D) bf16, (1,D) f32
        g2_ref, be2_ref,      # VMEM (1,D)    f32
        out_ref,              # VMEM (Bb,S,D) f32
    ):
        base = pl.program_id(0) * Bb

        x = x_ref[...]                                   # (Bb,S,D) f32
        x2d = x.reshape(Bb * S, D)

        # ---- fused QKV projection (bf16 operands, f32 accumulation) ----
        qkv = jnp.dot(x2d.astype(jnp.bfloat16), wqkvT_ref[...],
                      preferred_element_type=jnp.float32)   # (Bb*S, 3D)

        # ---- key-side mask per batch element in this block ----
        col = lax.broadcasted_iota(jnp.int32, (1, 1, S), 2)
        mask = jnp.concatenate(
            [col < vlens_ref[base + i] for i in range(Bb)], axis=0)  # (Bb,1,S)
        neg = jnp.float32(-1e30)

        # ---- per-head attention, batched over the Bb batch elements ----
        ctx_heads = []
        for h in range(H):                               # static, H small
            qh = qkv[:, h * Dh:(h + 1) * Dh].reshape(Bb, S, Dh)
            kh = qkv[:, D + h * Dh:D + (h + 1) * Dh].reshape(Bb, S, Dh)
            vh = qkv[:, 2 * D + h * Dh:2 * D + (h + 1) * Dh].reshape(Bb, S, Dh)

            scores = jnp.einsum('bqd,bkd->bqk',
                                qh.astype(jnp.bfloat16),
                                kh.astype(jnp.bfloat16),
                                preferred_element_type=jnp.float32)  # (Bb,S,S)
            scores = jnp.where(mask, scores, neg)
            m = jnp.max(scores, axis=-1, keepdims=True)
            p = jnp.exp(scores - m)
            p = p * pl.reciprocal(jnp.sum(p, axis=-1, keepdims=True),
                                  approx=True)
            ctx = jnp.einsum('bqk,bkd->bqd',
                             p.astype(jnp.bfloat16),
                             vh.astype(jnp.bfloat16),
                             preferred_element_type=jnp.float32)     # (Bb,S,Dh)
            ctx_heads.append(ctx.reshape(Bb * S, Dh))

        # merged heads -> single lane-dense output projection
        ctx_cat = jnp.concatenate(ctx_heads, axis=-1)                # (Bb*S, D)
        o2d = jnp.dot(ctx_cat.astype(jnp.bfloat16), woT_ref[...],
                      preferred_element_type=jnp.float32)            # (Bb*S, D)

        # ---- AddNorm 1 (dropout == identity in eval) ----
        y = o2d + x2d
        mu = jnp.mean(y, axis=-1, keepdims=True)
        var = jnp.mean((y - mu) * (y - mu), axis=-1, keepdims=True)
        y = (y - mu) * lax.rsqrt(var + 1e-5) * g1_ref[...] + be1_ref[...]

        # ---- Position-wise FFN ----
        h1 = jnp.dot(y.astype(jnp.bfloat16), w1T_ref[...],
                     preferred_element_type=jnp.float32) + b1_ref[...]
        h1 = jnp.maximum(h1, 0.0)
        f = jnp.dot(h1.astype(jnp.bfloat16), w2T_ref[...],
                    preferred_element_type=jnp.float32) + b2_ref[...]

        # ---- AddNorm 2 ----
        z = f + y
        mu2 = jnp.mean(z, axis=-1, keepdims=True)
        var2 = jnp.mean((z - mu2) * (z - mu2), axis=-1, keepdims=True)
        out = (z - mu2) * lax.rsqrt(var2 + 1e-5) * g2_ref[...] + be2_ref[...]
        out_ref[...] = out.reshape(Bb, S, D)

    return kernel


# ---------------------------------------------------------------------------
# Wrapper: parameter layout plumbing + pallas_call
# ---------------------------------------------------------------------------
def encoder_block(x, valid_lens, params, num_heads):
    (Wq, Wk, Wv, Wo, g1, be1, W1, b1, W2, b2, g2, be2) = params
    B, S, D = x.shape
    H = num_heads
    assert D % H == 0
    Dh = D // H
    F = W1.shape[0]

    # batch block: largest divisor of B that is <= 8 (more work per grid step)
    Bb = 1
    for cand in range(min(B, 8), 0, -1):
        if B % cand == 0:
            Bb = cand
            break

    scale = 1.0 / math.sqrt(Dh)
    # torch Linear: y = x @ W.T ; fold the attention scale into the Q block.
    wqkvT = jnp.concatenate([(Wq * scale).T, Wk.T, Wv.T],
                            axis=1).astype(jnp.bfloat16)      # (D, 3D)
    woT = Wo.T.astype(jnp.bfloat16)                           # (D, D)
    w1T = W1.T.astype(jnp.bfloat16)                           # (D, F)
    w2T = W2.T.astype(jnp.bfloat16)                           # (F, D)
    b1_ = b1.reshape(1, F).astype(jnp.float32)
    b2_ = b2.reshape(1, D).astype(jnp.float32)
    g1_ = g1.reshape(1, D).astype(jnp.float32)
    be1_ = be1.reshape(1, D).astype(jnp.float32)
    g2_ = g2.reshape(1, D).astype(jnp.float32)
    be2_ = be2.reshape(1, D).astype(jnp.float32)
    vlens = valid_lens.astype(jnp.int32)

    def full(shape):
        return pl.BlockSpec(shape, lambda i, vl: (0,) * len(shape))

    grid_spec = pltpu.PrefetchScalarGridSpec(
        num_scalar_prefetch=1,
        grid=(B // Bb,),
        in_specs=[
            pl.BlockSpec((Bb, S, D), lambda i, vl: (i, 0, 0)),   # x
            full((D, 3 * D)),                                    # Wqkv^T
            full((D, D)),                                        # Wo^T
            full((1, D)), full((1, D)),                          # LN1 gamma/beta
            full((D, F)), full((1, F)),                          # FFN dense1
            full((F, D)), full((1, D)),                          # FFN dense2
            full((1, D)), full((1, D)),                          # LN2 gamma/beta
        ],
        out_specs=pl.BlockSpec((Bb, S, D), lambda i, vl: (i, 0, 0)),
    )

    # VMEM budget estimate: bf16 weights (double-buffered by the pipeline)
    # + f32 activation tiles + intermediates; raise the scoped limit if needed.
    weight_bytes = 2 * int(wqkvT.size + woT.size + w1T.size + w2T.size)
    act_bytes = 4 * (2 * 2 * Bb * S * D + 4 * Bb * S * max(3 * D, F))
    vmem_limit = int(max(2 * weight_bytes + act_bytes + (1 << 20),
                         32 * 1024 * 1024))
    vmem_limit = min(vmem_limit, 64 * 1024 * 1024)   # stay within v7x physical

    kernel = _make_encoder_kernel(H, Bb, S, D, Dh, F)
    return pl.pallas_call(
        kernel,
        out_shape=jax.ShapeDtypeStruct((B, S, D), jnp.float32),
        grid_spec=grid_spec,
        compiler_params=pltpu.CompilerParams(
            dimension_semantics=("parallel",),
            vmem_limit_bytes=vmem_limit),
    )(vlens, x, wqkvT, woT, g1_, be1_, w1T, b1_, w2T, b2_, g2_, be2_)


# ---------------------------------------------------------------------------
# Pure-JAX f32 reference (intended semantics of the PyTorch module, eval mode)
# ---------------------------------------------------------------------------
def encoder_block_ref(x, valid_lens, params, num_heads):
    (Wq, Wk, Wv, Wo, g1, be1, W1, b1, W2, b2, g2, be2) = params
    B, S, D = x.shape
    H = num_heads
    Dh = D // H

    def ln(t, g, be):
        mu = jnp.mean(t, axis=-1, keepdims=True)
        var = jnp.mean((t - mu) ** 2, axis=-1, keepdims=True)
        return (t - mu) / jnp.sqrt(var + 1e-5) * g + be

    def split(t):  # (B,S,D) -> (B,H,S,Dh)
        return t.reshape(B, S, H, Dh).transpose(0, 2, 1, 3)

    q, k, v = split(x @ Wq.T), split(x @ Wk.T), split(x @ Wv.T)
    scores = jnp.einsum('bhqd,bhkd->bhqk', q, k) / math.sqrt(Dh)
    mask = jnp.arange(S)[None, None, None, :] < valid_lens[:, None, None, None]
    scores = jnp.where(mask, scores, -jnp.inf)
    p = jax.nn.softmax(scores, axis=-1)
    attn = jnp.einsum('bhqk,bhkd->bhqd', p, v).transpose(0, 2, 1, 3).reshape(B, S, D)
    y = ln(attn @ Wo.T + x, g1, be1)
    f = jnp.maximum(y @ W1.T + b1, 0.0) @ W2.T + b2
    return ln(f + y, g2, be2)


if __name__ == "__main__":
    # Small shapes: batch=2, seq=8, hidden=32, heads=4 (head_dim=8), ffn_hidden=64
    B, S, D, H, F = 2, 8, 32, 4, 64

    key = jax.random.PRNGKey(0)
    ks = jax.random.split(key, 16)
    scale = 1.0 / math.sqrt(D)
    Wq = jax.random.normal(ks[0], (D, D), jnp.float32) * scale
    Wk = jax.random.normal(ks[1], (D, D), jnp.float32) * scale
    Wv = jax.random.normal(ks[2], (D, D), jnp.float32) * scale
    Wo = jax.random.normal(ks[3], (D, D), jnp.float32) * scale
    g1 = 1.0 + 0.1 * jax.random.normal(ks[4], (D,), jnp.float32)
    be1 = 0.1 * jax.random.normal(ks[5], (D,), jnp.float32)
    W1 = jax.random.normal(ks[6], (F, D), jnp.float32) * scale
    b1 = 0.1 * jax.random.normal(ks[7], (F,), jnp.float32)
    W2 = jax.random.normal(ks[8], (D, F), jnp.float32) * (1.0 / math.sqrt(F))
    b2 = 0.1 * jax.random.normal(ks[9], (D,), jnp.float32)
    g2 = 1.0 + 0.1 * jax.random.normal(ks[10], (D,), jnp.float32)
    be2 = 0.1 * jax.random.normal(ks[11], (D,), jnp.float32)
    params = (Wq, Wk, Wv, Wo, g1, be1, W1, b1, W2, b2, g2, be2)

    x = jax.random.normal(ks[12], (B, S, D), jnp.float32)
    valid_lens = jnp.array([5, 8], dtype=jnp.int32)

    out = encoder_block(x, valid_lens, params, num_heads=H)
    out = jax.block_until_ready(out)

    ref = encoder_block_ref(x, valid_lens, params, num_heads=H)
    assert out.shape == (B, S, D)
    # bf16 matmul operands + EUP approx reciprocal -> relaxed tolerance vs f32 ref
    err = float(jnp.max(jnp.abs(out - ref)))
    assert jnp.allclose(out, ref, atol=3e-2, rtol=3e-2), f"max abs err {err}"

    print("KERNEL_OK")
</pallas_src>

<mosaic_0001>
module attributes {stable_mosaic.version = 11 : i64} {
  func.func @kernel(%arg0: i32, %arg1: memref<2xi32, #tpu.memory_space<smem>>, %arg2: memref<2x8x32xf32, #tpu.memory_space<vmem>>, %arg3: memref<32x96xbf16, #tpu.memory_space<vmem>>, %arg4: memref<32x32xbf16, #tpu.memory_space<vmem>>, %arg5: memref<1x32xf32, #tpu.memory_space<vmem>>, %arg6: memref<1x32xf32, #tpu.memory_space<vmem>>, %arg7: memref<32x64xbf16, #tpu.memory_space<vmem>>, %arg8: memref<1x64xf32, #tpu.memory_space<vmem>>, %arg9: memref<64x32xbf16, #tpu.memory_space<vmem>>, %arg10: memref<1x32xf32, #tpu.memory_space<vmem>>, %arg11: memref<1x32xf32, #tpu.memory_space<vmem>>, %arg12: memref<1x32xf32, #tpu.memory_space<vmem>>, %arg13: memref<2x8x32xf32, #tpu.memory_space<vmem>>) attributes {dimension_semantics = [#tpu.dimension_semantics<parallel>], iteration_bounds = array<i64: 1>, scalar_prefetch = 1 : i64, scratch_operands = 0 : i64, tpu.core_type = #tpu.core_type<tc>, window_params = [{transform_indices = @transform_0, window_bounds = array<i64: 2, 8, 32>}, {pipeline_mode = #tpu.pipeline_mode<synchronous>, transform_indices = @transform_1, window_bounds = array<i64: 32, 96>}, {pipeline_mode = #tpu.pipeline_mode<synchronous>, transform_indices = @transform_2, window_bounds = array<i64: 32, 32>}, {pipeline_mode = #tpu.pipeline_mode<synchronous>, transform_indices = @transform_3, window_bounds = array<i64: 1, 32>}, {pipeline_mode = #tpu.pipeline_mode<synchronous>, transform_indices = @transform_4, window_bounds = array<i64: 1, 32>}, {pipeline_mode = #tpu.pipeline_mode<synchronous>, transform_indices = @transform_5, window_bounds = array<i64: 32, 64>}, {pipeline_mode = #tpu.pipeline_mode<synchronous>, transform_indices = @transform_6, window_bounds = array<i64: 1, 64>}, {pipeline_mode = #tpu.pipeline_mode<synchronous>, transform_indices = @transform_7, window_bounds = array<i64: 64, 32>}, {pipeline_mode = #tpu.pipeline_mode<synchronous>, transform_indices = @transform_8, window_bounds = array<i64: 1, 32>}, {pipeline_mode = #tpu.pipeline_mode<synchronous>, transform_indices = @transform_9, window_bounds = array<i64: 1, 32>}, {pipeline_mode = #tpu.pipeline_mode<synchronous>, transform_indices = @transform_10, window_bounds = array<i64: 1, 32>}, {transform_indices = @transform_11, window_bounds = array<i64: 2, 8, 32>}]} {
    %c2_i32 = arith.constant 2 : i32
    %0 = arith.muli %arg0, %c2_i32 : i32
    %c0 = arith.constant 0 : index
    %c0_0 = arith.constant 0 : index
    %c0_1 = arith.constant 0 : index
    %1 = vector.load %arg2[%c0, %c0_0, %c0_1] : memref<2x8x32xf32, #tpu.memory_space<vmem>>, vector<2x8x32xf32>
    %2 = vector.shape_cast %1 : vector<2x8x32xf32> to vector<16x32xf32>
    %3 = arith.truncf %2 : vector<16x32xf32> to vector<16x32xbf16>
    %c0_2 = arith.constant 0 : index
    %c0_3 = arith.constant 0 : index
    %4 = vector.load %arg3[%c0_2, %c0_3] : memref<32x96xbf16, #tpu.memory_space<vmem>>, vector<32x96xbf16>
    %cst = arith.constant dense<0.000000e+00> : vector<16x96xf32>
    %5 = tpu.matmul %3, %4, %cst {dimension_numbers = #tpu.dot_dimension_numbers<[1], [0], [0], [1], [0, 0, 1, 1], [], []>} : vector<16x32xbf16>, vector<32x96xbf16>, vector<16x96xf32> -> vector<16x96xf32>
    %6 = tpu.iota {dimensions = array<i32: 2>} : vector<1x1x8xi32>
    %c0_i32 = arith.constant 0 : i32
    %7 = arith.addi %0, %c0_i32 : i32
    %8 = arith.index_cast %7 : i32 to index
    %9 = memref.load %arg1[%8] : memref<2xi32, #tpu.memory_space<smem>>
    %10 = vector.broadcast %9 : i32 to vector<1x1x8xi32>
    %11 = arith.cmpi slt, %6, %10 : vector<1x1x8xi32>
    %c1_i32 = arith.constant 1 : i32
    %12 = arith.addi %0, %c1_i32 : i32
    %13 = arith.index_cast %12 : i32 to index
    %14 = memref.load %arg1[%13] : memref<2xi32, #tpu.memory_space<smem>>
    %15 = vector.broadcast %14 : i32 to vector<1x1x8xi32>
    %16 = arith.cmpi slt, %6, %15 : vector<1x1x8xi32>
    %17 = tpu.concatenate %11, %16 in 0 : vector<1x1x8xi1>, vector<1x1x8xi1> -> vector<2x1x8xi1>
    %18 = vector.extract_strided_slice %5 {offsets = [0, 0], sizes = [16, 8], strides = [1, 1]} : vector<16x96xf32> to vector<16x8xf32>
    %19 = vector.shape_cast %18 : vector<16x8xf32> to vector<2x8x8xf32>
    %20 = vector.extract_strided_slice %5 {offsets = [0, 32], sizes = [16, 8], strides = [1, 1]} : vector<16x96xf32> to vector<16x8xf32>
    %21 = vector.shape_cast %20 : vector<16x8xf32> to vector<2x8x8xf32>
    %22 = vector.extract_strided_slice %5 {offsets = [0, 64], sizes = [16, 8], strides = [1, 1]} : vector<16x96xf32> to vector<16x8xf32>
    %23 = vector.shape_cast %22 : vector<16x8xf32> to vector<2x8x8xf32>
    %24 = arith.truncf %19 : vector<2x8x8xf32> to vector<2x8x8xbf16>
    %25 = arith.truncf %21 : vector<2x8x8xf32> to vector<2x8x8xbf16>
    "tpu.trace_start"() <{level = 10 : i32, message = "bqd,bkd->bqk"}> : () -> ()
    %cst_4 = arith.constant dense<0.000000e+00> : vector<2x8x8xf32>
    %26 = tpu.matmul %24, %25, %cst_4 {dimension_numbers = #tpu.dot_dimension_numbers<[2], [2], [1], [1], [0, 0, 0, 1, 1, 1], [0], [0]>} : vector<2x8x8xbf16>, vector<2x8x8xbf16>, vector<2x8x8xf32> -> vector<2x8x8xf32>
    %cst_5 = arith.constant -1.000000e+30 : f32
    "tpu.trace_stop"() : () -> ()
    %27 = vector.shape_cast %17 : vector<2x1x8xi1> to vector<2x1x8xi1>
    %28 = vector.broadcast %27 : vector<2x1x8xi1> to vector<2x8x8xi1>
    %29 = vector.broadcast %cst_5 : f32 to vector<2x8x8xf32>
    %30 = arith.select %28, %26, %29 : vector<2x8x8xi1>, vector<2x8x8xf32>
    %cst_6 = arith.constant dense<0xFF800000> : vector<2x8xf32>
    %31 = vector.multi_reduction <maximumf>, %30, %cst_6 [2] : vector<2x8x8xf32> to vector<2x8xf32>
    %32 = vector.shape_cast %31 : vector<2x8xf32> to vector<2x8x1xf32>
    %33 = vector.broadcast %32 : vector<2x8x1xf32> to vector<2x8x8xf32>
    %34 = arith.subf %30, %33 : vector<2x8x8xf32>
    %35 = math.exp %34 : vector<2x8x8xf32>
    %cst_7 = arith.constant dense<0.000000e+00> : vector<2x8xf32>
    %36 = vector.multi_reduction <add>, %35, %cst_7 [2] : vector<2x8x8xf32> to vector<2x8xf32>
    %37 = vector.shape_cast %36 : vector<2x8xf32> to vector<2x8x1xf32>
    %38 = tpu.reciprocal %37 {approx = true} : vector<2x8x1xf32> -> vector<2x8x1xf32>
    %39 = vector.broadcast %38 : vector<2x8x1xf32> to vector<2x8x8xf32>
    %40 = arith.mulf %35, %39 : vector<2x8x8xf32>
    %41 = arith.truncf %40 : vector<2x8x8xf32> to vector<2x8x8xbf16>
    %42 = arith.truncf %23 : vector<2x8x8xf32> to vector<2x8x8xbf16>
    "tpu.trace_start"() <{level = 10 : i32, message = "bqk,bkd->bqd"}> : () -> ()
    %cst_8 = arith.constant dense<0.000000e+00> : vector<2x8x8xf32>
    %43 = tpu.matmul %41, %42, %cst_8 {dimension_numbers = #tpu.dot_dimension_numbers<[2], [1], [1], [2], [0, 0, 0, 1, 1, 2], [0], [0]>} : vector<2x8x8xbf16>, vector<2x8x8xbf16>, vector<2x8x8xf32> -> vector<2x8x8xf32>
    "tpu.trace_stop"() : () -> ()
    %44 = vector.shape_cast %43 : vector<2x8x8xf32> to vector<16x8xf32>
    %45 = vector.extract_strided_slice %5 {offsets = [0, 8], sizes = [16, 8], strides = [1, 1]} : vector<16x96xf32> to vector<16x8xf32>
    %46 = vector.shape_cast %45 : vector<16x8xf32> to vector<2x8x8xf32>
    %47 = vector.extract_strided_slice %5 {offsets = [0, 40], sizes = [16, 8], strides = [1, 1]} : vector<16x96xf32> to vector<16x8xf32>
    %48 = vector.shape_cast %47 : vector<16x8xf32> to vector<2x8x8xf32>
    %49 = vector.extract_strided_slice %5 {offsets = [0, 72], sizes = [16, 8], strides = [1, 1]} : vector<16x96xf32> to vector<16x8xf32>
    %50 = vector.shape_cast %49 : vector<16x8xf32> to vector<2x8x8xf32>
    %51 = arith.truncf %46 : vector<2x8x8xf32> to vector<2x8x8xbf16>
    %52 = arith.truncf %48 : vector<2x8x8xf32> to vector<2x8x8xbf16>
    "tpu.trace_start"() <{level = 10 : i32, message = "bqd,bkd->bqk"}> : () -> ()
    %cst_9 = arith.constant dense<0.000000e+00> : vector<2x8x8xf32>
    %53 = tpu.matmul %51, %52, %cst_9 {dimension_numbers = #tpu.dot_dimension_numbers<[2], [2], [1], [1], [0, 0, 0, 1, 1, 1], [0], [0]>} : vector<2x8x8xbf16>, vector<2x8x8xbf16>, vector<2x8x8xf32> -> vector<2x8x8xf32>
    %cst_10 = arith.constant -1.000000e+30 : f32
    "tpu.trace_stop"() : () -> ()
    %54 = vector.shape_cast %17 : vector<2x1x8xi1> to vector<2x1x8xi1>
    %55 = vector.broadcast %54 : vector<2x1x8xi1> to vector<2x8x8xi1>
    %56 = vector.broadcast %cst_10 : f32 to vector<2x8x8xf32>
    %57 = arith.select %55, %53, %56 : vector<2x8x8xi1>, vector<2x8x8xf32>
    %cst_11 = arith.constant dense<0xFF800000> : vector<2x8xf32>
    %58 = vector.multi_reduction <maximumf>, %57, %cst_11 [2] : vector<2x8x8xf32> to vector<2x8xf32>
    %59 = vector.shape_cast %58 : vector<2x8xf32> to vector<2x8x1xf32>
    %60 = vector.broadcast %59 : vector<2x8x1xf32> to vector<2x8x8xf32>
    %61 = arith.subf %57, %60 : vector<2x8x8xf32>
    %62 = math.exp %61 : vector<2x8x8xf32>
    %cst_12 = arith.constant dense<0.000000e+00> : vector<2x8xf32>
    %63 = vector.multi_reduction <add>, %62, %cst_12 [2] : vector<2x8x8xf32> to vector<2x8xf32>
    %64 = vector.shape_cast %63 : vector<2x8xf32> to vector<2x8x1xf32>
    %65 = tpu.reciprocal %64 {approx = true} : vector<2x8x1xf32> -> vector<2x8x1xf32>
    %66 = vector.broadcast %65 : vector<2x8x1xf32> to vector<2x8x8xf32>
    %67 = arith.mulf %62, %66 : vector<2x8x8xf32>
    %68 = arith.truncf %67 : vector<2x8x8xf32> to vector<2x8x8xbf16>
    %69 = arith.truncf %50 : vector<2x8x8xf32> to vector<2x8x8xbf16>
    "tpu.trace_start"() <{level = 10 : i32, message = "bqk,bkd->bqd"}> : () -> ()
    %cst_13 = arith.constant dense<0.000000e+00> : vector<2x8x8xf32>
    %70 = tpu.matmul %68, %69, %cst_13 {dimension_numbers = #tpu.dot_dimension_numbers<[2], [1], [1], [2], [0, 0, 0, 1, 1, 2], [0], [0]>} : vector<2x8x8xbf16>, vector<2x8x8xbf16>, vector<2x8x8xf32> -> vector<2x8x8xf32>
    "tpu.trace_stop"() : () -> ()
    %71 = vector.shape_cast %70 : vector<2x8x8xf32> to vector<16x8xf32>
    %72 = vector.extract_strided_slice %5 {offsets = [0, 16], sizes = [16, 8], strides = [1, 1]} : vector<16x96xf32> to vector<16x8xf32>
    %73 = vector.shape_cast %72 : vector<16x8xf32> to vector<2x8x8xf32>
    %74 = vector.extract_strided_slice %5 {offsets = [0, 48], sizes = [16, 8], strides = [1, 1]} : vector<16x96xf32> to vector<16x8xf32>
    %75 = vector.shape_cast %74 : vector<16x8xf32> to vector<2x8x8xf32>
    %76 = vector.extract_strided_slice %5 {offsets = [0, 80], sizes = [16, 8], strides = [1, 1]} : vector<16x96xf32> to vector<16x8xf32>
    %77 = vector.shape_cast %76 : vector<16x8xf32> to vector<2x8x8xf32>
    %78 = arith.truncf %73 : vector<2x8x8xf32> to vector<2x8x8xbf16>
    %79 = arith.truncf %75 : vector<2x8x8xf32> to vector<2x8x8xbf16>
    "tpu.trace_start"() <{level = 10 : i32, message = "bqd,bkd->bqk"}> : () -> ()
    %cst_14 = arith.constant dense<0.000000e+00> : vector<2x8x8xf32>
    %80 = tpu.matmul %78, %79, %cst_14 {dimension_numbers = #tpu.dot_dimension_numbers<[2], [2], [1], [1], [0, 0, 0, 1, 1, 1], [0], [0]>} : vector<2x8x8xbf16>, vector<2x8x8xbf16>, vector<2x8x8xf32> -> vector<2x8x8xf32>
    %cst_15 = arith.constant -1.000000e+30 : f32
    "tpu.trace_stop"() : () -> ()
    %81 = vector.shape_cast %17 : vector<2x1x8xi1> to vector<2x1x8xi1>
    %82 = vector.broadcast %81 : vector<2x1x8xi1> to vector<2x8x8xi1>
    %83 = vector.broadcast %cst_15 : f32 to vector<2x8x8xf32>
    %84 = arith.select %82, %80, %83 : vector<2x8x8xi1>, vector<2x8x8xf32>
    %cst_16 = arith.constant dense<0xFF800000> : vector<2x8xf32>
    %85 = vector.multi_reduction <maximumf>, %84, %cst_16 [2] : vector<2x8x8xf32> to vector<2x8xf32>
    %86 = vector.shape_cast %85 : vector<2x8xf32> to vector<2x8x1xf32>
    %87 = vector.broadcast %86 : vector<2x8x1xf32> to vector<2x8x8xf32>
    %88 = arith.subf %84, %87 : vector<2x8x8xf32>
    %89 = math.exp %88 : vector<2x8x8xf32>
    %cst_17 = arith.constant dense<0.000000e+00> : vector<2x8xf32>
    %90 = vector.multi_reduction <add>, %89, %cst_17 [2] : vector<2x8x8xf32> to vector<2x8xf32>
    %91 = vector.shape_cast %90 : vector<2x8xf32> to vector<2x8x1xf32>
    %92 = tpu.reciprocal %91 {approx = true} : vector<2x8x1xf32> -> vector<2x8x1xf32>
    %93 = vector.broadcast %92 : vector<2x8x1xf32> to vector<2x8x8xf32>
    %94 = arith.mulf %89, %93 : vector<2x8x8xf32>
    %95 = arith.truncf %94 : vector<2x8x8xf32> to vector<2x8x8xbf16>
    %96 = arith.truncf %77 : vector<2x8x8xf32> to vector<2x8x8xbf16>
    "tpu.trace_start"() <{level = 10 : i32, message = "bqk,bkd->bqd"}> : () -> ()
    %cst_18 = arith.constant dense<0.000000e+00> : vector<2x8x8xf32>
    %97 = tpu.matmul %95, %96, %cst_18 {dimension_numbers = #tpu.dot_dimension_numbers<[2], [1], [1], [2], [0, 0, 0, 1, 1, 2], [0], [0]>} : vector<2x8x8xbf16>, vector<2x8x8xbf16>, vector<2x8x8xf32> -> vector<2x8x8xf32>
    "tpu.trace_stop"() : () -> ()
    %98 = vector.shape_cast %97 : vector<2x8x8xf32> to vector<16x8xf32>
    %99 = vector.extract_strided_slice %5 {offsets = [0, 24], sizes = [16, 8], strides = [1, 1]} : vector<16x96xf32> to vector<16x8xf32>
    %100 = vector.shape_cast %99 : vector<16x8xf32> to vector<2x8x8xf32>
    %101 = vector.extract_strided_slice %5 {offsets = [0, 56], sizes = [16, 8], strides = [1, 1]} : vector<16x96xf32> to vector<16x8xf32>
    %102 = vector.shape_cast %101 : vector<16x8xf32> to vector<2x8x8xf32>
    %103 = vector.extract_strided_slice %5 {offsets = [0, 88], sizes = [16, 8], strides = [1, 1]} : vector<16x96xf32> to vector<16x8xf32>
    %104 = vector.shape_cast %103 : vector<16x8xf32> to vector<2x8x8xf32>
    %105 = arith.truncf %100 : vector<2x8x8xf32> to vector<2x8x8xbf16>
    %106 = arith.truncf %102 : vector<2x8x8xf32> to vector<2x8x8xbf16>
    "tpu.trace_start"() <{level = 10 : i32, message = "bqd,bkd->bqk"}> : () -> ()
    %cst_19 = arith.constant dense<0.000000e+00> : vector<2x8x8xf32>
    %107 = tpu.matmul %105, %106, %cst_19 {dimension_numbers = #tpu.dot_dimension_numbers<[2], [2], [1], [1], [0, 0, 0, 1, 1, 1], [0], [0]>} : vector<2x8x8xbf16>, vector<2x8x8xbf16>, vector<2x8x8xf32> -> vector<2x8x8xf32>
    %cst_20 = arith.constant -1.000000e+30 : f32
    "tpu.trace_stop"() : () -> ()
    %108 = vector.shape_cast %17 : vector<2x1x8xi1> to vector<2x1x8xi1>
    %109 = vector.broadcast %108 : vector<2x1x8xi1> to vector<2x8x8xi1>
    %110 = vector.broadcast %cst_20 : f32 to vector<2x8x8xf32>
    %111 = arith.select %109, %107, %110 : vector<2x8x8xi1>, vector<2x8x8xf32>
    %cst_21 = arith.constant dense<0xFF800000> : vector<2x8xf32>
    %112 = vector.multi_reduction <maximumf>, %111, %cst_21 [2] : vector<2x8x8xf32> to vector<2x8xf32>
    %113 = vector.shape_cast %112 : vector<2x8xf32> to vector<2x8x1xf32>
    %114 = vector.broadcast %113 : vector<2x8x1xf32> to vector<2x8x8xf32>
    %115 = arith.subf %111, %114 : vector<2x8x8xf32>
    %116 = math.exp %115 : vector<2x8x8xf32>
    %cst_22 = arith.constant dense<0.000000e+00> : vector<2x8xf32>
    %117 = vector.multi_reduction <add>, %116, %cst_22 [2] : vector<2x8x8xf32> to vector<2x8xf32>
    %118 = vector.shape_cast %117 : vector<2x8xf32> to vector<2x8x1xf32>
    %119 = tpu.reciprocal %118 {approx = true} : vector<2x8x1xf32> -> vector<2x8x1xf32>
    %120 = vector.broadcast %119 : vector<2x8x1xf32> to vector<2x8x8xf32>
    %121 = arith.mulf %116, %120 : vector<2x8x8xf32>
    %122 = arith.truncf %121 : vector<2x8x8xf32> to vector<2x8x8xbf16>
    %123 = arith.truncf %104 : vector<2x8x8xf32> to vector<2x8x8xbf16>
    "tpu.trace_start"() <{level = 10 : i32, message = "bqk,bkd->bqd"}> : () -> ()
    %cst_23 = arith.constant dense<0.000000e+00> : vector<2x8x8xf32>
    %124 = tpu.matmul %122, %123, %cst_23 {dimension_numbers = #tpu.dot_dimension_numbers<[2], [1], [1], [2], [0, 0, 0, 1, 1, 2], [0], [0]>} : vector<2x8x8xbf16>, vector<2x8x8xbf16>, vector<2x8x8xf32> -> vector<2x8x8xf32>
    "tpu.trace_stop"() : () -> ()
    %125 = vector.shape_cast %124 : vector<2x8x8xf32> to vector<16x8xf32>
    %126 = tpu.concatenate %44, %71, %98, %125 in 1 : vector<16x8xf32>, vector<16x8xf32>, vector<16x8xf32>, vector<16x8xf32> -> vector<16x32xf32>
    %127 = arith.truncf %126 : vector<16x32xf32> to vector<16x32xbf16>
    %c0_24 = arith.constant 0 : index
    %c0_25 = arith.constant 0 : index
    %128 = vector.load %arg4[%c0_24, %c0_25] : memref<32x32xbf16, #tpu.memory_space<vmem>>, vector<32x32xbf16>
    %cst_26 = arith.constant dense<0.000000e+00> : vector<16x32xf32>
    %129 = tpu.matmul %127, %128, %cst_26 {dimension_numbers = #tpu.dot_dimension_numbers<[1], [0], [0], [1], [0, 0, 1, 1], [], []>} : vector<16x32xbf16>, vector<32x32xbf16>, vector<16x32xf32> -> vector<16x32xf32>
    %130 = arith.addf %129, %2 : vector<16x32xf32>
    %cst_27 = arith.constant dense<0.000000e+00> : vector<16xf32>
    %131 = vector.multi_reduction <add>, %130, %cst_27 [1] : vector<16x32xf32> to vector<16xf32>
    %132 = vector.shape_cast %131 : vector<16xf32> to vector<16x1xf32>
    %cst_28 = arith.constant 3.200000e+01 : f32
    %133 = vector.broadcast %cst_28 : f32 to vector<16x1xf32>
    %134 = arith.divf %132, %133 : vector<16x1xf32>
    %135 = vector.broadcast %134 : vector<16x1xf32> to vector<16x32xf32>
    %136 = arith.subf %130, %135 : vector<16x32xf32>
    %137 = vector.broadcast %134 : vector<16x1xf32> to vector<16x32xf32>
    %138 = arith.subf %130, %137 : vector<16x32xf32>
    %139 = arith.mulf %136, %138 : vector<16x32xf32>
    %cst_29 = arith.constant dense<0.000000e+00> : vector<16xf32>
    %140 = vector.multi_reduction <add>, %139, %cst_29 [1] : vector<16x32xf32> to vector<16xf32>
    %141 = vector.shape_cast %140 : vector<16xf32> to vector<16x1xf32>
    %cst_30 = arith.constant 3.200000e+01 : f32
    %142 = vector.broadcast %cst_30 : f32 to vector<16x1xf32>
    %143 = arith.divf %141, %142 : vector<16x1xf32>
    %144 = vector.broadcast %134 : vector<16x1xf32> to vector<16x32xf32>
    %145 = arith.subf %130, %144 : vector<16x32xf32>
    %cst_31 = arith.constant 9.99999974E-6 : f32
    %146 = vector.broadcast %cst_31 : f32 to vector<16x1xf32>
    %147 = arith.addf %143, %146 : vector<16x1xf32>
    %148 = math.rsqrt %147 : vector<16x1xf32>
    %149 = vector.broadcast %148 : vector<16x1xf32> to vector<16x32xf32>
    %150 = arith.mulf %145, %149 : vector<16x32xf32>
    %c0_32 = arith.constant 0 : index
    %c0_33 = arith.constant 0 : index
    %151 = vector.load %arg5[%c0_32, %c0_33] : memref<1x32xf32, #tpu.memory_space<vmem>>, vector<1x32xf32>
    %152 = vector.broadcast %151 : vector<1x32xf32> to vector<16x32xf32>
    %153 = arith.mulf %150, %152 : vector<16x32xf32>
    %c0_34 = arith.constant 0 : index
    %c0_35 = arith.constant 0 : index
    %154 = vector.load %arg6[%c0_34, %c0_35] : memref<1x32xf32, #tpu.memory_space<vmem>>, vector<1x32xf32>
    %155 = vector.broadcast %154 : vector<1x32xf32> to vector<16x32xf32>
    %156 = arith.addf %153, %155 : vector<16x32xf32>
    %157 = arith.truncf %156 : vector<16x32xf32> to vector<16x32xbf16>
    %c0_36 = arith.constant 0 : index
    %c0_37 = arith.constant 0 : index
    %158 = vector.load %arg7[%c0_36, %c0_37] : memref<32x64xbf16, #tpu.memory_space<vmem>>, vector<32x64xbf16>
    %cst_38 = arith.constant dense<0.000000e+00> : vector<16x64xf32>
    %159 = tpu.matmul %157, %158, %cst_38 {dimension_numbers = #tpu.dot_dimension_numbers<[1], [0], [0], [1], [0, 0, 1, 1], [], []>} : vector<16x32xbf16>, vector<32x64xbf16>, vector<16x64xf32> -> vector<16x64xf32>
    %c0_39 = arith.constant 0 : index
    %c0_40 = arith.constant 0 : index
    %160 = vector.load %arg8[%c0_39, %c0_40] : memref<1x64xf32, #tpu.memory_space<vmem>>, vector<1x64xf32>
    %161 = vector.broadcast %160 : vector<1x64xf32> to vector<16x64xf32>
    %162 = arith.addf %159, %161 : vector<16x64xf32>
    %cst_41 = arith.constant 0.000000e+00 : f32
    %163 = vector.broadcast %cst_41 : f32 to vector<16x64xf32>
    %164 = arith.maximumf %162, %163 : vector<16x64xf32>
    %165 = arith.truncf %164 : vector<16x64xf32> to vector<16x64xbf16>
    %c0_42 = arith.constant 0 : index
    %c0_43 = arith.constant 0 : index
    %166 = vector.load %arg9[%c0_42, %c0_43] : memref<64x32xbf16, #tpu.memory_space<vmem>>, vector<64x32xbf16>
    %cst_44 = arith.constant dense<0.000000e+00> : vector<16x32xf32>
    %167 = tpu.matmul %165, %166, %cst_44 {dimension_numbers = #tpu.dot_dimension_numbers<[1], [0], [0], [1], [0, 0, 1, 1], [], []>} : vector<16x64xbf16>, vector<64x32xbf16>, vector<16x32xf32> -> vector<16x32xf32>
    %c0_45 = arith.constant 0 : index
    %c0_46 = arith.constant 0 : index
    %168 = vector.load %arg10[%c0_45, %c0_46] : memref<1x32xf32, #tpu.memory_space<vmem>>, vector<1x32xf32>
    %169 = vector.broadcast %168 : vector<1x32xf32> to vector<16x32xf32>
    %170 = arith.addf %167, %169 : vector<16x32xf32>
    %171 = arith.addf %170, %156 : vector<16x32xf32>
    %cst_47 = arith.constant dense<0.000000e+00> : vector<16xf32>
    %172 = vector.multi_reduction <add>, %171, %cst_47 [1] : vector<16x32xf32> to vector<16xf32>
    %173 = vector.shape_cast %172 : vector<16xf32> to vector<16x1xf32>
    %cst_48 = arith.constant 3.200000e+01 : f32
    %174 = vector.broadcast %cst_48 : f32 to vector<16x1xf32>
    %175 = arith.divf %173, %174 : vector<16x1xf32>
    %176 = vector.broadcast %175 : vector<16x1xf32> to vector<16x32xf32>
    %177 = arith.subf %171, %176 : vector<16x32xf32>
    %178 = vector.broadcast %175 : vector<16x1xf32> to vector<16x32xf32>
    %179 = arith.subf %171, %178 : vector<16x32xf32>
    %180 = arith.mulf %177, %179 : vector<16x32xf32>
    %cst_49 = arith.constant dense<0.000000e+00> : vector<16xf32>
    %181 = vector.multi_reduction <add>, %180, %cst_49 [1] : vector<16x32xf32> to vector<16xf32>
    %182 = vector.shape_cast %181 : vector<16xf32> to vector<16x1xf32>
    %cst_50 = arith.constant 3.200000e+01 : f32
    %183 = vector.broadcast %cst_50 : f32 to vector<16x1xf32>
    %184 = arith.divf %182, %183 : vector<16x1xf32>
    %185 = vector.broadcast %175 : vector<16x1xf32> to vector<16x32xf32>
    %186 = arith.subf %171, %185 : vector<16x32xf32>
    %cst_51 = arith.constant 9.99999974E-6 : f32
    %187 = vector.broadcast %cst_51 : f32 to vector<16x1xf32>
    %188 = arith.addf %184, %187 : vector<16x1xf32>
    %189 = math.rsqrt %188 : vector<16x1xf32>
    %190 = vector.broadcast %189 : vector<16x1xf32> to vector<16x32xf32>
    %191 = arith.mulf %186, %190 : vector<16x32xf32>
    %c0_52 = arith.constant 0 : index
    %c0_53 = arith.constant 0 : index
    %192 = vector.load %arg11[%c0_52, %c0_53] : memref<1x32xf32, #tpu.memory_space<vmem>>, vector<1x32xf32>
    %193 = vector.broadcast %192 : vector<1x32xf32> to vector<16x32xf32>
    %194 = arith.mulf %191, %193 : vector<16x32xf32>
    %c0_54 = arith.constant 0 : index
    %c0_55 = arith.constant 0 : index
    %195 = vector.load %arg12[%c0_54, %c0_55] : memref<1x32xf32, #tpu.memory_space<vmem>>, vector<1x32xf32>
    %196 = vector.broadcast %195 : vector<1x32xf32> to vector<16x32xf32>
    %197 = arith.addf %194, %196 : vector<16x32xf32>
    %198 = vector.shape_cast %197 : vector<16x32xf32> to vector<2x8x32xf32>
    %c0_56 = arith.constant 0 : index
    %c0_57 = arith.constant 0 : index
    %c0_58 = arith.constant 0 : index
    %199 = vector.load %arg13[%c0_56, %c0_57, %c0_58] : memref<2x8x32xf32, #tpu.memory_space<vmem>>, vector<2x8x32xf32>
    tpu.vector_store %arg13[%c0_56, %c0_57, %c0_58], %198 {strides = array<i32>} : memref<2x8x32xf32, #tpu.memory_space<vmem>>, vector<2x8x32xf32>,
    return
  }
  func.func @transform_0(%arg0: i32, %arg1: memref<2xi32, #tpu.memory_space<smem>>) -> (i32, i32, i32) {
    %c0_i32 = arith.constant 0 : i32
    %c0_i32_0 = arith.constant 0 : i32
    %c0_i32_1 = arith.constant 0 : i32
    return %arg0, %c0_i32, %c0_i32_0 : i32, i32, i32
  }
  func.func @transform_1(%arg0: i32, %arg1: memref<2xi32, #tpu.memory_space<smem>>) -> (i32, i32) {
    %c0_i32 = arith.constant 0 : i32
    %c0_i32_0 = arith.constant 0 : i32
    %c0_i32_1 = arith.constant 0 : i32
    return %c0_i32, %c0_i32_0 : i32, i32
  }
  func.func @transform_2(%arg0: i32, %arg1: memref<2xi32, #tpu.memory_space<smem>>) -> (i32, i32) {
    %c0_i32 = arith.constant 0 : i32
    %c0_i32_0 = arith.constant 0 : i32
    %c0_i32_1 = arith.constant 0 : i32
    return %c0_i32, %c0_i32_0 : i32, i32
  }
  func.func @transform_3(%arg0: i32, %arg1: memref<2xi32, #tpu.memory_space<smem>>) -> (i32, i32) {
    %c0_i32 = arith.constant 0 : i32
    %c0_i32_0 = arith.constant 0 : i32
    %c0_i32_1 = arith.constant 0 : i32
    return %c0_i32, %c0_i32_0 : i32, i32
  }
  func.func @transform_4(%arg0: i32, %arg1: memref<2xi32, #tpu.memory_space<smem>>) -> (i32, i32) {
    %c0_i32 = arith.constant 0 : i32
    %c0_i32_0 = arith.constant 0 : i32
    %c0_i32_1 = arith.constant 0 : i32
    return %c0_i32, %c0_i32_0 : i32, i32
  }
  func.func @transform_5(%arg0: i32, %arg1: memref<2xi32, #tpu.memory_space<smem>>) -> (i32, i32) {
    %c0_i32 = arith.constant 0 : i32
    %c0_i32_0 = arith.constant 0 : i32
    %c0_i32_1 = arith.constant 0 : i32
    return %c0_i32, %c0_i32_0 : i32, i32
  }
  func.func @transform_6(%arg0: i32, %arg1: memref<2xi32, #tpu.memory_space<smem>>) -> (i32, i32) {
    %c0_i32 = arith.constant 0 : i32
    %c0_i32_0 = arith.constant 0 : i32
    %c0_i32_1 = arith.constant 0 : i32
    return %c0_i32, %c0_i32_0 : i32, i32
  }
  func.func @transform_7(%arg0: i32, %arg1: memref<2xi32, #tpu.memory_space<smem>>) -> (i32, i32) {
    %c0_i32 = arith.constant 0 : i32
    %c0_i32_0 = arith.constant 0 : i32
    %c0_i32_1 = arith.constant 0 : i32
    return %c0_i32, %c0_i32_0 : i32, i32
  }
  func.func @transform_8(%arg0: i32, %arg1: memref<2xi32, #tpu.memory_space<smem>>) -> (i32, i32) {
    %c0_i32 = arith.constant 0 : i32
    %c0_i32_0 = arith.constant 0 : i32
    %c0_i32_1 = arith.constant 0 : i32
    return %c0_i32, %c0_i32_0 : i32, i32
  }
  func.func @transform_9(%arg0: i32, %arg1: memref<2xi32, #tpu.memory_space<smem>>) -> (i32, i32) {
    %c0_i32 = arith.constant 0 : i32
    %c0_i32_0 = arith.constant 0 : i32
    %c0_i32_1 = arith.constant 0 : i32
    return %c0_i32, %c0_i32_0 : i32, i32
  }
  func.func @transform_10(%arg0: i32, %arg1: memref<2xi32, #tpu.memory_space<smem>>) -> (i32, i32) {
    %c0_i32 = arith.constant 0 : i32
    %c0_i32_0 = arith.constant 0 : i32
    %c0_i32_1 = arith.constant 0 : i32
    return %c0_i32, %c0_i32_0 : i32, i32
  }
  func.func @transform_11(%arg0: i32, %arg1: memref<2xi32, #tpu.memory_space<smem>>) -> (i32, i32, i32) {
    %c0_i32 = arith.constant 0 : i32
    %c0_i32_0 = arith.constant 0 : i32
    %c0_i32_1 = arith.constant 0 : i32
    return %arg0, %c0_i32, %c0_i32_0 : i32, i32, i32
  }
}

</mosaic_0001>

<llo_original>
// kernel: tpu_custom_call.1
$region0: #{tpu_custom_call.1}
  #allocation0 [shape = 'u32[]', space=smem, size = 0x4, offset = 0x4, fixed_abs, tag = 'smem constant byte address 0x4 - core index']
  #allocation1 [shape = 'u32[144,128]{1,0:T(1,128)}', space=vmem, size = 0x12000, scoped, tag = 'internal scratch']
  #allocation2 [shape = 's32[1]{0}', space=sflag, size = 0x4, scoped, tag = 'scoped memory for tpu_custom_call.1']
  #allocation3 [shape = 'u8[512]{0}', space=smem, size = 0x200, scoped, tag = 'prefetched SMEM operand 0']
  %s0 = inlined_call_operand.hbm [shape: s32[2], index: 0, kind: input, shape index: {}]
  %s1 = inlined_call_operand.vmem [shape: f32[2,8,32], index: 1, kind: input, shape index: {}]
  %s2 = inlined_call_operand.vmem [shape: bf16[32,96], index: 2, kind: input, shape index: {}]
  %s3 = inlined_call_operand.vmem [shape: bf16[32,32], index: 3, kind: input, shape index: {}]
  %s4 = inlined_call_operand.vmem [shape: f32[1,32], index: 4, kind: input, shape index: {}]
  %s5 = inlined_call_operand.vmem [shape: f32[1,32], index: 5, kind: input, shape index: {}]
  %s6 = inlined_call_operand.hbm [shape: bf16[32,64], index: 6, kind: input, shape index: {}]
  %s7 = inlined_call_operand.vmem [shape: f32[1,64], index: 7, kind: input, shape index: {}]
  %s8 = inlined_call_operand.vmem [shape: bf16[64,32], index: 8, kind: input, shape index: {}]
  %s9 = inlined_call_operand.vmem [shape: f32[1,32], index: 9, kind: input, shape index: {}]
  %s10 = inlined_call_operand.vmem [shape: f32[1,32], index: 10, kind: input, shape index: {}]
  %s11 = inlined_call_operand.vmem [shape: f32[1,32], index: 11, kind: input, shape index: {}]
  %s12 = inlined_call_operand.hbm [shape: f32[2,8,32], index: 12, kind: output, shape index: {}]
  %s13 = sld [smem:[#allocation0]]
  $region58: #{tpu_custom_call.1} parent=0
    _
  %s15 = ssub.s32 1, %s13
  %s16 = scalar_select 0, %s15, %s13
  %18 = dma.hbm_to_smem %s0, 16, [#allocation3], [#allocation2]
  %19 = dma.done [#allocation2], 16
  %20 = sfence
  $region1: #{tpu_custom_call.1} parent=0
    #allocation4 [shape = 'u8[8192]{0}', space=vmem, size = 0x2000, scoped, tag = 'input window, operand 6, single buffered']
    #allocation5 [shape = 's32[1]{0}', space=sflag, size = 0x4, scoped, tag = 'scoped memory for tpu_custom_call.1']
    #allocation6 [shape = 's32[1]{0}', space=sflag, size = 0x4, scoped, tag = 'scoped memory for tpu_custom_call.1']
    #allocation7 [shape = 'u8[8192]{0}', space=vmem, size = 0x2000, scoped, tag = 'output window, operand 0, single buffered']
    %21 = vsyncpa [#allocation5], 0
    %22 = vsyncpa [#allocation6], 0
    // Predicated region
    $region2: #{tpu_custom_call.1} parent=1 // pred_check
      _
    $region3: #{tpu_custom_call.1} parent=1 // pred_check_branch
      %24 = sbr.rel (0) target = $region5
    $region4: #{tpu_custom_call.1} parent=1 // pred_region
      _
    $region5: #{tpu_custom_call.1} parent=1 // pred_fallthru
      _
    // Predicated region
    $region6: #{tpu_custom_call.1} parent=1 // pred_check
      _
    $region7: #{tpu_custom_call.1} parent=1 // pred_check_branch
      %26 = sbr.rel (0) target = $region9
    $region8: #{tpu_custom_call.1} parent=1 // pred_region
      _
    $region9: #{tpu_custom_call.1} parent=1 // pred_fallthru
      _
    // Predicated region
    $region10: #{tpu_custom_call.1} parent=1 // pred_check
      _
    $region11: #{tpu_custom_call.1} parent=1 // pred_check_branch
      %28 = sbr.rel (0) target = $region13
    $region12: #{tpu_custom_call.1} parent=1 // pred_region
      _
    $region13: #{tpu_custom_call.1} parent=1 // pred_fallthru
      _
    // Predicated region
    $region14: #{tpu_custom_call.1} parent=1 // pred_check
      _
    $region15: #{tpu_custom_call.1} parent=1 // pred_check_branch
      %30 = sbr.rel (0) target = $region17
    $region16: #{tpu_custom_call.1} parent=1 // pred_region
      _
    $region17: #{tpu_custom_call.1} parent=1 // pred_fallthru
      _
    // Predicated region
    $region18: #{tpu_custom_call.1} parent=1 // pred_check
      _
    $region19: #{tpu_custom_call.1} parent=1 // pred_check_branch
      %32 = sbr.rel (0) target = $region21
    $region20: #{tpu_custom_call.1} parent=1 // pred_region
      _
    $region21: #{tpu_custom_call.1} parent=1 // pred_fallthru
      _
    // Predicated region
    $region22: #{tpu_custom_call.1} parent=1 // pred_check
      _
    $region23: #{tpu_custom_call.1} parent=1 // pred_check_branch
      %34 = sbr.rel (0) target = $region25
    $region24: #{tpu_custom_call.1} parent=1 // pred_region
      %s36 = ssub.s32 256, 256
      %37 = vsyncadd [#allocation5], %s36
      %s38 = sshll.u32 [#allocation4], 4
      %s39 = int_to_ptr.vmem [resolvable:$true] %s38
      %44 = dma.hbm_to_vmem [thread:$0]  %s6, 256, %s39, [#allocation5], 64, 64, 4
    $region25: #{tpu_custom_call.1} parent=1 // pred_fallthru
      _
    // Predicated region
    $region26: #{tpu_custom_call.1} parent=1 // pred_check
      _
    $region27: #{tpu_custom_call.1} parent=1 // pred_check_branch
      %46 = sbr.rel (0) target = $region29
    $region28: #{tpu_custom_call.1} parent=1 // pred_region
      _
    $region29: #{tpu_custom_call.1} parent=1 // pred_fallthru
      _
    // Predicated region
    $region30: #{tpu_custom_call.1} parent=1 // pred_check
      _
    $region31: #{tpu_custom_call.1} parent=1 // pred_check_branch
      %48 = sbr.rel (0) target = $region33
    $region32: #{tpu_custom_call.1} parent=1 // pred_region
      _
    $region33: #{tpu_custom_call.1} parent=1 // pred_fallthru
      _
    // Predicated region
    $region34: #{tpu_custom_call.1} parent=1 // pred_check
      _
    $region35: #{tpu_custom_call.1} parent=1 // pred_check_branch
      %50 = sbr.rel (0) target = $region37
    $region36: #{tpu_custom_call.1} parent=1 // pred_region
      _
    $region37: #{tpu_custom_call.1} parent=1 // pred_fallthru
      _
    // Predicated region
    $region38: #{tpu_custom_call.1} parent=1 // pred_check
      _
    $region39: #{tpu_custom_call.1} parent=1 // pred_check_branch
      %52 = sbr.rel (0) target = $region41
    $region40: #{tpu_custom_call.1} parent=1 // pred_region
      _
    $region41: #{tpu_custom_call.1} parent=1 // pred_fallthru
      _
    // Predicated region
    $region42: #{tpu_custom_call.1} parent=1 // pred_check
      _
    $region43: #{tpu_custom_call.1} parent=1 // pred_check_branch
      %54 = sbr.rel (0) target = $region45
    $region44: #{tpu_custom_call.1} parent=1 // pred_region
      _
    $region45: #{tpu_custom_call.1} parent=1 // pred_fallthru
      _
    // Predicated region
    $region46: #{tpu_custom_call.1} parent=1 // pred_check
      _
    $region47: #{tpu_custom_call.1} parent=1 // pred_check_branch
      %56 = sbr.rel (0) target = $region49
    $region48: #{tpu_custom_call.1} parent=1 // pred_region
      %57 = dma.done [#allocation5], 256
    $region49: #{tpu_custom_call.1} parent=1 // pred_fallthru
      _
    %s59 = smul.u32 0, 2
    %v60 = vld [vmem:[%s1] sm:$0xff]
    %v61 = vld [vmem:[%s1 + $0x8] sm:$0xff]
    %v62 = vpack.c.bf16 %v61, %v60
    %v63 = vld [vmem:[%s2] sm:$0xf]
    %v64 = vld [vmem:[%s2 + $0x4] sm:$0xf]
    %v65 = vld [vmem:[%s2 + $0x8] sm:$0xf]
    %v66 = vld [vmem:[%s2 + $0xc] sm:$0xf]
    %v71 = vunpack.c.l.b16 %v63
    %v72 = vunpack.c.l.b16 %v64
    %v73 = vunpack.c.l.b16 %v65
    %v74 = vunpack.c.l.b16 %v66
    %v75 = vpack.c.b16 %v72, %v71
    %v76 = vpack.c.b16 %v74, %v73
    %vm79 = vcmask 261120
    %v81 = vsel %vm79, %v62, 0
    %83 = vmatprep.subr.bf16.mxu0 0
    %84 = vmatpush1.bf16.msra.mxu0 %v75
    %85 = vmatprep.subr.bf16.mxu0 0
    %86 = vmatpush1.bf16.msra.mxu0 %v76
    %87 = vmatprep.subr.bf16.mxu0 0
    %88 = vmatpush1.bf16.msra.mxu0 0
    %89 = vmatprep.subr.bf16.mxu0 0
    %90 = vmatpush1.bf16.msra.mxu0 0
    %91 = vmatprep.subr.bf16.mxu0 0
    %92 = vmatpush1.bf16.msra.mxu0 0
    %93 = vmatprep.subr.bf16.mxu0 0
    %94 = vmatpush1.bf16.msra.mxu0 0
    %95 = vmatprep.subr.bf16.mxu0 0
    %96 = vmatpush1.bf16.msra.mxu0 0
    %97 = vmatprep.subr.bf16.mxu0 0
    %98 = vmatpush1.bf16.msra.mxu0 0
    %99 = vmatprep.subr.bf16.mxu0 0
    %100 = vmatpush1.bf16.msra.mxu0 0
    %101 = vmatprep.subr.bf16.mxu0 0
    %102 = vmatpush1.bf16.msra.mxu0 0
    %103 = vmatprep.subr.bf16.mxu0 0
    %104 = vmatpush1.bf16.msra.mxu0 0
    %105 = vmatprep.subr.bf16.mxu0 0
    %106 = vmatpush1.bf16.msra.mxu0 0
    %107 = vmatprep.subr.bf16.mxu0 0
    %108 = vmatpush1.bf16.msra.mxu0 0
    %109 = vmatprep.subr.bf16.mxu0 0
    %110 = vmatpush1.bf16.msra.mxu0 0
    %111 = vmatprep.subr.bf16.mxu0 0
    %112 = vmatpush1.bf16.msra.mxu0 0
    %113 = vmatprep.subr.bf16.mxu0 0
    %114 = vmatpush1.bf16.msra.mxu0 0
    %115 = vmatprep.mubr.bf16.mxu0 0
    %116 = vmatmul.mubr.bf16.gmra.mrb[0].mxu0 %v81
    %v117 = vpop.f32.mrb[0].mxu0
    %v118 = vadd.f32 0.0, %v117
    %v119 = vpop.f32.mrb[0].mxu0
    %v120 = vpop.f32.mrb[0].mxu0
    %v121 = vadd.f32 0.0, %v120
    %v122 = vpop.f32.mrb[0].mxu0
    %123 = vdwg.mxu0
    %v124 = vlaneseq
    %v125 = vand.u32 %v124, 127
    %s126 = sld [smem:[#allocation3 + %s59]]
    %v127 = vstv %s126
    %vm128 = vcmp.lt.s32.totalorder %v125, %v127
    %s129 = sadd.s32 %s59, 1
    %s130 = sld [smem:[#allocation3 + %s129]]
    %v131 = vstv %s130
    %vm132 = vcmp.lt.s32.totalorder %v125, %v131
    %v133 = vpack.c.bf16 %v118, %v118
    %v134 = vpack.c.bf16 %v121, %v121
    %136 = vrot.lane.b32.xlu0 %v133, 96
    %v137 = vpop.permute.xlu0 %136
    %vm138 = vcmask 64512
    %v140 = vsel %vm138, %v133, 0
    %v143 = vsel %vm138, %v137, 0
    %145 = vmatprep.subr.bf16.mxu0 0
    %146 = vmatpush1.bf16.xpose.msra.mxu0 %v143
    %147 = vmatprep.subr.bf16.mxu0 0
    %148 = vmatpush1.bf16.xpose.msra.mxu0 0
    %149 = vmatprep.subr.bf16.mxu0 0
    %150 = vmatpush1.bf16.xpose.msra.mxu0 0
    %151 = vmatprep.subr.bf16.mxu0 0
    %152 = vmatpush1.bf16.xpose.msra.mxu0 0
    %153 = vmatprep.subr.bf16.mxu0 0
    %154 = vmatpush1.bf16.xpose.msra.mxu0 0
    %155 = vmatprep.subr.bf16.mxu0 0
    %156 = vmatpush1.bf16.xpose.msra.mxu0 0
    %157 = vmatprep.subr.bf16.mxu0 0
    %158 = vmatpush1.bf16.xpose.msra.mxu0 0
    %159 = vmatprep.subr.bf16.mxu0 0
    %160 = vmatpush1.bf16.xpose.msra.mxu0 0
    %161 = vmatprep.subr.bf16.mxu0 0
    %162 = vmatpush1.bf16.xpose.msra.mxu0 0
    %163 = vmatprep.subr.bf16.mxu0 0
    %164 = vmatpush1.bf16.xpose.msra.mxu0 0
    %165 = vmatprep.subr.bf16.mxu0 0
    %166 = vmatpush1.bf16.xpose.msra.mxu0 0
    %167 = vmatprep.subr.bf16.mxu0 0
    %168 = vmatpush1.bf16.xpose.msra.mxu0 0
    %169 = vmatprep.subr.bf16.mxu0 0
    %170 = vmatpush1.bf16.xpose.msra.mxu0 0
    %171 = vmatprep.subr.bf16.mxu0 0
    %172 = vmatpush1.bf16.xpose.msra.mxu0 0
    %173 = vmatprep.subr.bf16.mxu0 0
    %174 = vmatpush1.bf16.xpose.msra.mxu0 0
    %175 = vmatprep.subr.bf16.mxu0 0
    %176 = vmatpush1.bf16.xpose.msra.mxu0 0
    %177 = vmatprep.mubr.bf16.mxu0 0
    %178 = vmatmul.mubr.bf16.gmra.mrb[0].mxu0 %v140
    %v179 = vpop.f32.mrb[0].mxu0
    %v180 = vadd.f32 0.0, %v179
    %v181 = vpop.f32.mrb[0].mxu0
    %v182 = vpop.f32.mrb[0].mxu0
    %v183 = vpop.f32.mrb[0].mxu0
    %184 = vdwg.mxu0
    %186 = vrot.lane.b32.xlu0 %v134, 96
    %v187 = vpop.permute.xlu0 %186
    %v189 = vsel %vm138, %v134, 0
    %v192 = vsel %vm138, %v187, 0
    %194 = vmatprep.subr.bf16.mxu0 0
    %195 = vmatpush1.bf16.xpose.msra.mxu0 %v192
    %196 = vmatprep.subr.bf16.mxu0 0
    %197 = vmatpush1.bf16.xpose.msra.mxu0 0
    %198 = vmatprep.subr.bf16.mxu0 0
    %199 = vmatpush1.bf16.xpose.msra.mxu0 0
    %200 = vmatprep.subr.bf16.mxu0 0
    %201 = vmatpush1.bf16.xpose.msra.mxu0 0
    %202 = vmatprep.subr.bf16.mxu0 0
    %203 = vmatpush1.bf16.xpose.msra.mxu0 0
    %204 = vmatprep.subr.bf16.mxu0 0
    %205 = vmatpush1.bf16.xpose.msra.mxu0 0
    %206 = vmatprep.subr.bf16.mxu0 0
    %207 = vmatpush1.bf16.xpose.msra.mxu0 0
    %208 = vmatprep.subr.bf16.mxu0 0
    %209 = vmatpush1.bf16.xpose.msra.mxu0 0
    %210 = vmatprep.subr.bf16.mxu0 0
    %211 = vmatpush1.bf16.xpose.msra.mxu0 0
    %212 = vmatprep.subr.bf16.mxu0 0
    %213 = vmatpush1.bf16.xpose.msra.mxu0 0
    %214 = vmatprep.subr.bf16.mxu0 0
    %215 = vmatpush1.bf16.xpose.msra.mxu0 0
    %216 = vmatprep.subr.bf16.mxu0 0
    %217 = vmatpush1.bf16.xpose.msra.mxu0 0
    %218 = vmatprep.subr.bf16.mxu0 0
    %219 = vmatpush1.bf16.xpose.msra.mxu0 0
    %220 = vmatprep.subr.bf16.mxu0 0
    %221 = vmatpush1.bf16.xpose.msra.mxu0 0
    %222 = vmatprep.subr.bf16.mxu0 0
    %223 = vmatpush1.bf16.xpose.msra.mxu0 0
    %224 = vmatprep.subr.bf16.mxu0 0
    %225 = vmatpush1.bf16.xpose.msra.mxu0 0
    %226 = vmatprep.mubr.bf16.mxu0 0
    %227 = vmatmul.mubr.bf16.gmra.mrb[0].mxu0 %v189
    %v228 = vpop.f32.mrb[0].mxu0
    %v229 = vadd.f32 0.0, %v228
    %v230 = vpop.f32.mrb[0].mxu0
    %v231 = vpop.f32.mrb[0].mxu0
    %v232 = vpop.f32.mrb[0].mxu0
    %233 = vdwg.mxu0
    %v234 = vsel %vm128, 1, 0
    %v235 = vsel %vm132, 1, 0
    %v236 = vlaneseq
    %v237 = vshrl.u32 %v236, 7
    %v238 = vsub.s32 0, %v237
    %v239 = vrot.slane %v234, %v238
    %v240 = vlaneseq
    %v241 = vshrl.u32 %v240, 7
    %v242 = vsub.s32 0, %v241
    %v243 = vrot.slane %v235, %v242
    %vm244 = vcmp.eq.s32.totalorder %v239, 1
    %vm245 = vcmp.eq.s32.totalorder %v243, 1
    %v246 = vsel %vm244, %v180, -1e+30
    %v247 = vsel %vm245, %v229, -1e+30
    %v248 = vsel %vm138, %v246, -inf
    %249 = vmax.xlane.f32.xlu0 %v248
    %v250 = vpop.xlane.xlu0 %249
    %v251 = vsel %vm138, %v247, -inf
    %252 = vmax.xlane.f32.xlu0 %v251
    %v253 = vpop.xlane.xlu0 %252
    %v254 = vsub.f32 %v246, %v250
    %v255 = vsub.f32 %v247, %v253
    %v256 = vmul.f32 %v254, 1.442695
    %v257 = vpow.pop %v256
    %v258 = vmul.f32 %v255, 1.442695
    %v259 = vpow.pop %v258
    %v260 = vsel %vm138, %v257, 0.0
    %261 = vadd.xlane.f32.xlu0 %v260
    %v262 = vpop.xlane.xlu0 %261
    %v263 = vsel %vm138, %v259, 0.0
    %264 = vadd.xlane.f32.xlu0 %v263
    %v265 = vpop.xlane.xlu0 %264
    %v266 = vrcp.pop %v262
    %v267 = vrcp.pop %v265
    %v268 = vmul.f32 %v257, %v266
    %v269 = vmul.f32 %v259, %v267
    %v270 = vpack.c.bf16 %v268, %v268
    %v271 = vpack.c.bf16 %v269, %v269
    %272 = vrot.lane.b32.xlu0 %v133, 64
    %v273 = vpop.permute.xlu0 %272
    %v275 = vsel %vm138, %v270, 0
    %vm277 = vcmask 1043456
    %v279 = vsel %vm277, %v273, 0
    %281 = vmatprep.subr.bf16.mxu0 0
    %282 = vmatpush1.bf16.msra.mxu0 %v279
    %283 = vmatprep.subr.bf16.mxu0 0
    %284 = vmatpush1.bf16.msra.mxu0 0
    %285 = vmatprep.subr.bf16.mxu0 0
    %286 = vmatpush1.bf16.msra.mxu0 0
    %287 = vmatprep.subr.bf16.mxu0 0
    %288 = vmatpush1.bf16.msra.mxu0 0
    %289 = vmatprep.subr.bf16.mxu0 0
    %290 = vmatpush1.bf16.msra.mxu0 0
    %291 = vmatprep.subr.bf16.mxu0 0
    %292 = vmatpush1.bf16.msra.mxu0 0
    %293 = vmatprep.subr.bf16.mxu0 0
    %294 = vmatpush1.bf16.msra.mxu0 0
    %295 = vmatprep.subr.bf16.mxu0 0
    %296 = vmatpush1.bf16.msra.mxu0 0
    %297 = vmatprep.subr.bf16.mxu0 0
    %298 = vmatpush1.bf16.msra.mxu0 0
    %299 = vmatprep.subr.bf16.mxu0 0
    %300 = vmatpush1.bf16.msra.mxu0 0
    %301 = vmatprep.subr.bf16.mxu0 0
    %302 = vmatpush1.bf16.msra.mxu0 0
    %303 = vmatprep.subr.bf16.mxu0 0
    %304 = vmatpush1.bf16.msra.mxu0 0
    %305 = vmatprep.subr.bf16.mxu0 0
    %306 = vmatpush1.bf16.msra.mxu0 0
    %307 = vmatprep.subr.bf16.mxu0 0
    %308 = vmatpush1.bf16.msra.mxu0 0
    %309 = vmatprep.subr.bf16.mxu0 0
    %310 = vmatpush1.bf16.msra.mxu0 0
    %311 = vmatprep.subr.bf16.mxu0 0
    %312 = vmatpush1.bf16.msra.mxu0 0
    %313 = vmatprep.mubr.bf16.mxu0 0
    %314 = vmatmul.mubr.bf16.gmra.mrb[0].mxu0 %v275
    %v315 = vpop.f32.mrb[0].mxu0
    %v316 = vadd.f32 0.0, %v315
    %v317 = vpop.f32.mrb[0].mxu0
    %v318 = vpop.f32.mrb[0].mxu0
    %v319 = vpop.f32.mrb[0].mxu0
    %320 = vdwg.mxu0
    %321 = vrot.lane.b32.xlu0 %v134, 64
    %v322 = vpop.permute.xlu0 %321
    %v324 = vsel %vm138, %v271, 0
    %v327 = vsel %vm277, %v322, 0
    %329 = vmatprep.subr.bf16.mxu0 0
    %330 = vmatpush1.bf16.msra.mxu0 %v327
    %331 = vmatprep.subr.bf16.mxu0 0
    %332 = vmatpush1.bf16.msra.mxu0 0
    %333 = vmatprep.subr.bf16.mxu0 0
    %334 = vmatpush1.bf16.msra.mxu0 0
    %335 = vmatprep.subr.bf16.mxu0 0
    %336 = vmatpush1.bf16.msra.mxu0 0
    %337 = vmatprep.subr.bf16.mxu0 0
    %338 = vmatpush1.bf16.msra.mxu0 0
    %339 = vmatprep.subr.bf16.mxu0 0
    %340 = vmatpush1.bf16.msra.mxu0 0
    %341 = vmatprep.subr.bf16.mxu0 0
    %342 = vmatpush1.bf16.msra.mxu0 0
    %343 = vmatprep.subr.bf16.mxu0 0
    %344 = vmatpush1.bf16.msra.mxu0 0
    %345 = vmatprep.subr.bf16.mxu0 0
    %346 = vmatpush1.bf16.msra.mxu0 0
    %347 = vmatprep.subr.bf16.mxu0 0
    %348 = vmatpush1.bf16.msra.mxu0 0
    %349 = vmatprep.subr.bf16.mxu0 0
    %350 = vmatpush1.bf16.msra.mxu0 0
    %351 = vmatprep.subr.bf16.mxu0 0
    %352 = vmatpush1.bf16.msra.mxu0 0
    %353 = vmatprep.subr.bf16.mxu0 0
    %354 = vmatpush1.bf16.msra.mxu0 0
    %355 = vmatprep.subr.bf16.mxu0 0
    %356 = vmatpush1.bf16.msra.mxu0 0
    %357 = vmatprep.subr.bf16.mxu0 0
    %358 = vmatpush1.bf16.msra.mxu0 0
    %359 = vmatprep.subr.bf16.mxu0 0
    %360 = vmatpush1.bf16.msra.mxu0 0
    %361 = vmatprep.mubr.bf16.mxu0 0
    %362 = vmatmul.mubr.bf16.gmra.mrb[0].mxu0 %v324
    %v363 = vpop.f32.mrb[0].mxu0
    %v364 = vadd.f32 0.0, %v363
    %v365 = vpop.f32.mrb[0].mxu0
    %v366 = vpop.f32.mrb[0].mxu0
    %v367 = vpop.f32.mrb[0].mxu0
    %368 = vdwg.mxu0
    %369 = vrot.lane.b32.xlu0 %v133, 120
    %v370 = vpop.permute.xlu0 %369
    %371 = vrot.lane.b32.xlu0 %v133, 88
    %v372 = vpop.permute.xlu0 %371
    %v374 = vsel %vm138, %v370, 0
    %v377 = vsel %vm138, %v372, 0
    %379 = vmatprep.subr.bf16.mxu0 0
    %380 = vmatpush1.bf16.xpose.msra.mxu0 %v377
    %381 = vmatprep.subr.bf16.mxu0 0
    %382 = vmatpush1.bf16.xpose.msra.mxu0 0
    %383 = vmatprep.subr.bf16.mxu0 0
    %384 = vmatpush1.bf16.xpose.msra.mxu0 0
    %385 = vmatprep.subr.bf16.mxu0 0
    %386 = vmatpush1.bf16.xpose.msra.mxu0 0
    %387 = vmatprep.subr.bf16.mxu0 0
    %388 = vmatpush1.bf16.xpose.msra.mxu0 0
    %389 = vmatprep.subr.bf16.mxu0 0
    %390 = vmatpush1.bf16.xpose.msra.mxu0 0
    %391 = vmatprep.subr.bf16.mxu0 0
    %392 = vmatpush1.bf16.xpose.msra.mxu0 0
    %393 = vmatprep.subr.bf16.mxu0 0
    %394 = vmatpush1.bf16.xpose.msra.mxu0 0
    %395 = vmatprep.subr.bf16.mxu0 0
    %396 = vmatpush1.bf16.xpose.msra.mxu0 0
    %397 = vmatprep.subr.bf16.mxu0 0
    %398 = vmatpush1.bf16.xpose.msra.mxu0 0
    %399 = vmatprep.subr.bf16.mxu0 0
    %400 = vmatpush1.bf16.xpose.msra.mxu0 0
    %401 = vmatprep.subr.bf16.mxu0 0
    %402 = vmatpush1.bf16.xpose.msra.mxu0 0
    %403 = vmatprep.subr.bf16.mxu0 0
    %404 = vmatpush1.bf16.xpose.msra.mxu0 0
    %405 = vmatprep.subr.bf16.mxu0 0
    %406 = vmatpush1.bf16.xpose.msra.mxu0 0
    %407 = vmatprep.subr.bf16.mxu0 0
    %408 = vmatpush1.bf16.xpose.msra.mxu0 0
    %409 = vmatprep.subr.bf16.mxu0 0
    %410 = vmatpush1.bf16.xpose.msra.mxu0 0
    %411 = vmatprep.mubr.bf16.mxu0 0
    %412 = vmatmul.mubr.bf16.gmra.mrb[0].mxu0 %v374
    %v413 = vpop.f32.mrb[0].mxu0
    %v414 = vadd.f32 0.0, %v413
    %v415 = vpop.f32.mrb[0].mxu0
    %v416 = vpop.f32.mrb[0].mxu0
    %v417 = vpop.f32.mrb[0].mxu0
    %418 = vdwg.mxu0
    %419 = vrot.lane.b32.xlu0 %v134, 120
    %v420 = vpop.permute.xlu0 %419
    %421 = vrot.lane.b32.xlu0 %v134, 88
    %v422 = vpop.permute.xlu0 %421
    %v424 = vsel %vm138, %v420, 0
    %v427 = vsel %vm138, %v422, 0
    %429 = vmatprep.subr.bf16.mxu0 0
    %430 = vmatpush1.bf16.xpose.msra.mxu0 %v427
    %431 = vmatprep.subr.bf16.mxu0 0
    %432 = vmatpush1.bf16.xpose.msra.mxu0 0
    %433 = vmatprep.subr.bf16.mxu0 0
    %434 = vmatpush1.bf16.xpose.msra.mxu0 0
    %435 = vmatprep.subr.bf16.mxu0 0
    %436 = vmatpush1.bf16.xpose.msra.mxu0 0
    %437 = vmatprep.subr.bf16.mxu0 0
    %438 = vmatpush1.bf16.xpose.msra.mxu0 0
    %439 = vmatprep.subr.bf16.mxu0 0
    %440 = vmatpush1.bf16.xpose.msra.mxu0 0
    %441 = vmatprep.subr.bf16.mxu0 0
    %442 = vmatpush1.bf16.xpose.msra.mxu0 0
    %443 = vmatprep.subr.bf16.mxu0 0
    %444 = vmatpush1.bf16.xpose.msra.mxu0 0
    %445 = vmatprep.subr.bf16.mxu0 0
    %446 = vmatpush1.bf16.xpose.msra.mxu0 0
    %447 = vmatprep.subr.bf16.mxu0 0
    %448 = vmatpush1.bf16.xpose.msra.mxu0 0
    %449 = vmatprep.subr.bf16.mxu0 0
    %450 = vmatpush1.bf16.xpose.msra.mxu0 0
    %451 = vmatprep.subr.bf16.mxu0 0
    %452 = vmatpush1.bf16.xpose.msra.mxu0 0
    %453 = vmatprep.subr.bf16.mxu0 0
    %454 = vmatpush1.bf16.xpose.msra.mxu0 0
    %455 = vmatprep.subr.bf16.mxu0 0
    %456 = vmatpush1.bf16.xpose.msra.mxu0 0
    %457 = vmatprep.subr.bf16.mxu0 0
    %458 = vmatpush1.bf16.xpose.msra.mxu0 0
    %459 = vmatprep.subr.bf16.mxu0 0
    %460 = vmatpush1.bf16.xpose.msra.mxu0 0
    %461 = vmatprep.mubr.bf16.mxu0 0
    %462 = vmatmul.mubr.bf16.gmra.mrb[0].mxu0 %v424
    %v463 = vpop.f32.mrb[0].mxu0
    %v464 = vadd.f32 0.0, %v463
    %v465 = vpop.f32.mrb[0].mxu0
    %v466 = vpop.f32.mrb[0].mxu0
    %v467 = vpop.f32.mrb[0].mxu0
    %468 = vdwg.mxu0
    %v469 = vsel %vm244, %v414, -1e+30
    %v470 = vsel %vm245, %v464, -1e+30
    %v471 = vsel %vm138, %v469, -inf
    %472 = vmax.xlane.f32.xlu0 %v471
    %v473 = vpop.xlane.xlu0 %472
    %v474 = vsel %vm138, %v470, -inf
    %475 = vmax.xlane.f32.xlu0 %v474
    %v476 = vpop.xlane.xlu0 %475
    %v477 = vsub.f32 %v469, %v473
    %v478 = vsub.f32 %v470, %v476
    %v479 = vmul.f32 %v477, 1.442695
    %v480 = vpow.pop %v479
    %v481 = vmul.f32 %v478, 1.442695
    %v482 = vpow.pop %v481
    %v483 = vsel %vm138, %v480, 0.0
    %484 = vadd.xlane.f32.xlu0 %v483
    %v485 = vpop.xlane.xlu0 %484
    %v486 = vsel %vm138, %v482, 0.0
    %487 = vadd.xlane.f32.xlu0 %v486
    %v488 = vpop.xlane.xlu0 %487
    %v489 = vrcp.pop %v485
    %v490 = vrcp.pop %v488
    %v491 = vmul.f32 %v480, %v489
    %v492 = vmul.f32 %v482, %v490
    %v493 = vpack.c.bf16 %v491, %v491
    %v494 = vpack.c.bf16 %v492, %v492
    %495 = vrot.lane.b32.xlu0 %v133, 56
    %v496 = vpop.permute.xlu0 %495
    %v498 = vsel %vm138, %v493, 0
    %v501 = vsel %vm277, %v496, 0
    %503 = vmatprep.subr.bf16.mxu0 0
    %504 = vmatpush1.bf16.msra.mxu0 %v501
    %505 = vmatprep.subr.bf16.mxu0 0
    %506 = vmatpush1.bf16.msra.mxu0 0
    %507 = vmatprep.subr.bf16.mxu0 0
    %508 = vmatpush1.bf16.msra.mxu0 0
    %509 = vmatprep.subr.bf16.mxu0 0
    %510 = vmatpush1.bf16.msra.mxu0 0
    %511 = vmatprep.subr.bf16.mxu0 0
    %512 = vmatpush1.bf16.msra.mxu0 0
    %513 = vmatprep.subr.bf16.mxu0 0
    %514 = vmatpush1.bf16.msra.mxu0 0
    %515 = vmatprep.subr.bf16.mxu0 0
    %516 = vmatpush1.bf16.msra.mxu0 0
    %517 = vmatprep.subr.bf16.mxu0 0
    %518 = vmatpush1.bf16.msra.mxu0 0
    %519 = vmatprep.subr.bf16.mxu0 0
    %520 = vmatpush1.bf16.msra.mxu0 0
    %521 = vmatprep.subr.bf16.mxu0 0
    %522 = vmatpush1.bf16.msra.mxu0 0
    %523 = vmatprep.subr.bf16.mxu0 0
    %524 = vmatpush1.bf16.msra.mxu0 0
    %525 = vmatprep.subr.bf16.mxu0 0
    %526 = vmatpush1.bf16.msra.mxu0 0
    %527 = vmatprep.subr.bf16.mxu0 0
    %528 = vmatpush1.bf16.msra.mxu0 0
    %529 = vmatprep.subr.bf16.mxu0 0
    %530 = vmatpush1.bf16.msra.mxu0 0
    %531 = vmatprep.subr.bf16.mxu0 0
    %532 = vmatpush1.bf16.msra.mxu0 0
    %533 = vmatprep.subr.bf16.mxu0 0
    %534 = vmatpush1.bf16.msra.mxu0 0
    %535 = vmatprep.mubr.bf16.mxu0 0
    %536 = vmatmul.mubr.bf16.gmra.mrb[0].mxu0 %v498
    %v537 = vpop.f32.mrb[0].mxu0
    %v538 = vadd.f32 0.0, %v537
    %v539 = vpop.f32.mrb[0].mxu0
    %v540 = vpop.f32.mrb[0].mxu0
    %v541 = vpop.f32.mrb[0].mxu0
    %542 = vdwg.mxu0
    %543 = vrot.lane.b32.xlu0 %v134, 56
    %v544 = vpop.permute.xlu0 %543
    %v546 = vsel %vm138, %v494, 0
    %v549 = vsel %vm277, %v544, 0
    %551 = vmatprep.subr.bf16.mxu0 0
    %552 = vmatpush1.bf16.msra.mxu0 %v549
    %553 = vmatprep.subr.bf16.mxu0 0
    %554 = vmatpush1.bf16.msra.mxu0 0
    %555 = vmatprep.subr.bf16.mxu0 0
    %556 = vmatpush1.bf16.msra.mxu0 0
    %557 = vmatprep.subr.bf16.mxu0 0
    %558 = vmatpush1.bf16.msra.mxu0 0
    %559 = vmatprep.subr.bf16.mxu0 0
    %560 = vmatpush1.bf16.msra.mxu0 0
    %561 = vmatprep.subr.bf16.mxu0 0
    %562 = vmatpush1.bf16.msra.mxu0 0
    %563 = vmatprep.subr.bf16.mxu0 0
    %564 = vmatpush1.bf16.msra.mxu0 0
    %565 = vmatprep.subr.bf16.mxu0 0
    %566 = vmatpush1.bf16.msra.mxu0 0
    %567 = vmatprep.subr.bf16.mxu0 0
    %568 = vmatpush1.bf16.msra.mxu0 0
    %569 = vmatprep.subr.bf16.mxu0 0
    %570 = vmatpush1.bf16.msra.mxu0 0
    %571 = vmatprep.subr.bf16.mxu0 0
    %572 = vmatpush1.bf16.msra.mxu0 0
    %573 = vmatprep.subr.bf16.mxu0 0
    %574 = vmatpush1.bf16.msra.mxu0 0
    %575 = vmatprep.subr.bf16.mxu0 0
    %576 = vmatpush1.bf16.msra.mxu0 0
    %577 = vmatprep.subr.bf16.mxu0 0
    %578 = vmatpush1.bf16.msra.mxu0 0
    %579 = vmatprep.subr.bf16.mxu0 0
    %580 = vmatpush1.bf16.msra.mxu0 0
    %581 = vmatprep.subr.bf16.mxu0 0
    %582 = vmatpush1.bf16.msra.mxu0 0
    %583 = vmatprep.mubr.bf16.mxu0 0
    %584 = vmatmul.mubr.bf16.gmra.mrb[0].mxu0 %v546
    %v585 = vpop.f32.mrb[0].mxu0
    %v586 = vadd.f32 0.0, %v585
    %v587 = vpop.f32.mrb[0].mxu0
    %v588 = vpop.f32.mrb[0].mxu0
    %v589 = vpop.f32.mrb[0].mxu0
    %590 = vdwg.mxu0
    %591 = vrot.lane.b32.xlu0 %v133, 112
    %v592 = vpop.permute.xlu0 %591
    %593 = vrot.lane.b32.xlu0 %v133, 80
    %v594 = vpop.permute.xlu0 %593
    %v596 = vsel %vm138, %v592, 0
    %v599 = vsel %vm138, %v594, 0
    %601 = vmatprep.subr.bf16.mxu0 0
    %602 = vmatpush1.bf16.xpose.msra.mxu0 %v599
    %603 = vmatprep.subr.bf16.mxu0 0
    %604 = vmatpush1.bf16.xpose.msra.mxu0 0
    %605 = vmatprep.subr.bf16.mxu0 0
    %606 = vmatpush1.bf16.xpose.msra.mxu0 0
    %607 = vmatprep.subr.bf16.mxu0 0
    %608 = vmatpush1.bf16.xpose.msra.mxu0 0
    %609 = vmatprep.subr.bf16.mxu0 0
    %610 = vmatpush1.bf16.xpose.msra.mxu0 0
    %611 = vmatprep.subr.bf16.mxu0 0
    %612 = vmatpush1.bf16.xpose.msra.mxu0 0
    %613 = vmatprep.subr.bf16.mxu0 0
    %614 = vmatpush1.bf16.xpose.msra.mxu0 0
    %615 = vmatprep.subr.bf16.mxu0 0
    %616 = vmatpush1.bf16.xpose.msra.mxu0 0
    %617 = vmatprep.subr.bf16.mxu0 0
    %618 = vmatpush1.bf16.xpose.msra.mxu0 0
    %619 = vmatprep.subr.bf16.mxu0 0
    %620 = vmatpush1.bf16.xpose.msra.mxu0 0
    %621 = vmatprep.subr.bf16.mxu0 0
    %622 = vmatpush1.bf16.xpose.msra.mxu0 0
    %623 = vmatprep.subr.bf16.mxu0 0
    %624 = vmatpush1.bf16.xpose.msra.mxu0 0
    %625 = vmatprep.subr.bf16.mxu0 0
    %626 = vmatpush1.bf16.xpose.msra.mxu0 0
    %627 = vmatprep.subr.bf16.mxu0 0
    %628 = vmatpush1.bf16.xpose.msra.mxu0 0
    %629 = vmatprep.subr.bf16.mxu0 0
    %630 = vmatpush1.bf16.xpose.msra.mxu0 0
    %631 = vmatprep.subr.bf16.mxu0 0
    %632 = vmatpush1.bf16.xpose.msra.mxu0 0
    %633 = vmatprep.mubr.bf16.mxu0 0
    %634 = vmatmul.mubr.bf16.gmra.mrb[0].mxu0 %v596
    %v635 = vpop.f32.mrb[0].mxu0
    %v636 = vadd.f32 0.0, %v635
    %v637 = vpop.f32.mrb[0].mxu0
    %v638 = vpop.f32.mrb[0].mxu0
    %v639 = vpop.f32.mrb[0].mxu0
    %640 = vdwg.mxu0
    %641 = vrot.lane.b32.xlu0 %v134, 112
    %v642 = vpop.permute.xlu0 %641
    %643 = vrot.lane.b32.xlu0 %v134, 80
    %v644 = vpop.permute.xlu0 %643
    %v646 = vsel %vm138, %v642, 0
    %v649 = vsel %vm138, %v644, 0
    %651 = vmatprep.subr.bf16.mxu0 0
    %652 = vmatpush1.bf16.xpose.msra.mxu0 %v649
    %653 = vmatprep.subr.bf16.mxu0 0
    %654 = vmatpush1.bf16.xpose.msra.mxu0 0
    %655 = vmatprep.subr.bf16.mxu0 0
    %656 = vmatpush1.bf16.xpose.msra.mxu0 0
    %657 = vmatprep.subr.bf16.mxu0 0
    %658 = vmatpush1.bf16.xpose.msra.mxu0 0
    %659 = vmatprep.subr.bf16.mxu0 0
    %660 = vmatpush1.bf16.xpose.msra.mxu0 0
    %661 = vmatprep.subr.bf16.mxu0 0
    %662 = vmatpush1.bf16.xpose.msra.mxu0 0
    %663 = vmatprep.subr.bf16.mxu0 0
    %664 = vmatpush1.bf16.xpose.msra.mxu0 0
    %665 = vmatprep.subr.bf16.mxu0 0
    %666 = vmatpush1.bf16.xpose.msra.mxu0 0
    %667 = vmatprep.subr.bf16.mxu0 0
    %668 = vmatpush1.bf16.xpose.msra.mxu0 0
    %669 = vmatprep.subr.bf16.mxu0 0
    %670 = vmatpush1.bf16.xpose.msra.mxu0 0
    %671 = vmatprep.subr.bf16.mxu0 0
    %672 = vmatpush1.bf16.xpose.msra.mxu0 0
    %673 = vmatprep.subr.bf16.mxu0 0
    %674 = vmatpush1.bf16.xpose.msra.mxu0 0
    %675 = vmatprep.subr.bf16.mxu0 0
    %676 = vmatpush1.bf16.xpose.msra.mxu0 0
    %677 = vmatprep.subr.bf16.mxu0 0
    %678 = vmatpush1.bf16.xpose.msra.mxu0 0
    %679 = vmatprep.subr.bf16.mxu0 0
    %680 = vmatpush1.bf16.xpose.msra.mxu0 0
    %681 = vmatprep.subr.bf16.mxu0 0
    %682 = vmatpush1.bf16.xpose.msra.mxu0 0
    %683 = vmatprep.mubr.bf16.mxu0 0
    %684 = vmatmul.mubr.bf16.gmra.mrb[0].mxu0 %v646
    %v685 = vpop.f32.mrb[0].mxu0
    %v686 = vadd.f32 0.0, %v685
    %v687 = vpop.f32.mrb[0].mxu0
    %v688 = vpop.f32.mrb[0].mxu0
    %v689 = vpop.f32.mrb[0].mxu0
    %690 = vdwg.mxu0
    %v691 = vsel %vm244, %v636, -1e+30
    %v692 = vsel %vm245, %v686, -1e+30
    %v693 = vsel %vm138, %v691, -inf
    %694 = vmax.xlane.f32.xlu0 %v693
    %v695 = vpop.xlane.xlu0 %694
    %v696 = vsel %vm138, %v692, -inf
    %697 = vmax.xlane.f32.xlu0 %v696
    %v698 = vpop.xlane.xlu0 %697
    %v699 = vsub.f32 %v691, %v695
    %v700 = vsub.f32 %v692, %v698
    %v701 = vmul.f32 %v699, 1.442695
    %v702 = vpow.pop %v701
    %v703 = vmul.f32 %v700, 1.442695
    %v704 = vpow.pop %v703
    %v705 = vsel %vm138, %v702, 0.0
    %706 = vadd.xlane.f32.xlu0 %v705
    %v707 = vpop.xlane.xlu0 %706
    %v708 = vsel %vm138, %v704, 0.0
    %709 = vadd.xlane.f32.xlu0 %v708
    %v710 = vpop.xlane.xlu0 %709
    %v711 = vrcp.pop %v707
    %v712 = vrcp.pop %v710
    %v713 = vmul.f32 %v702, %v711
    %v714 = vmul.f32 %v704, %v712
    %v715 = vpack.c.bf16 %v713, %v713
    %v716 = vpack.c.bf16 %v714, %v714
    %717 = vrot.lane.b32.xlu0 %v133, 48
    %v718 = vpop.permute.xlu0 %717
    %v720 = vsel %vm138, %v715, 0
    %v723 = vsel %vm277, %v718, 0
    %725 = vmatprep.subr.bf16.mxu0 0
    %726 = vmatpush1.bf16.msra.mxu0 %v723
    %727 = vmatprep.subr.bf16.mxu0 0
    %728 = vmatpush1.bf16.msra.mxu0 0
    %729 = vmatprep.subr.bf16.mxu0 0
    %730 = vmatpush1.bf16.msra.mxu0 0
    %731 = vmatprep.subr.bf16.mxu0 0
    %732 = vmatpush1.bf16.msra.mxu0 0
    %733 = vmatprep.subr.bf16.mxu0 0
    %734 = vmatpush1.bf16.msra.mxu0 0
    %735 = vmatprep.subr.bf16.mxu0 0
    %736 = vmatpush1.bf16.msra.mxu0 0
    %737 = vmatprep.subr.bf16.mxu0 0
    %738 = vmatpush1.bf16.msra.mxu0 0
    %739 = vmatprep.subr.bf16.mxu0 0
    %740 = vmatpush1.bf16.msra.mxu0 0
    %741 = vmatprep.subr.bf16.mxu0 0
    %742 = vmatpush1.bf16.msra.mxu0 0
    %743 = vmatprep.subr.bf16.mxu0 0
    %744 = vmatpush1.bf16.msra.mxu0 0
    %745 = vmatprep.subr.bf16.mxu0 0
    %746 = vmatpush1.bf16.msra.mxu0 0
    %747 = vmatprep.subr.bf16.mxu0 0
    %748 = vmatpush1.bf16.msra.mxu0 0
    %749 = vmatprep.subr.bf16.mxu0 0
    %750 = vmatpush1.bf16.msra.mxu0 0
    %751 = vmatprep.subr.bf16.mxu0 0
    %752 = vmatpush1.bf16.msra.mxu0 0
    %753 = vmatprep.subr.bf16.mxu0 0
    %754 = vmatpush1.bf16.msra.mxu0 0
    %755 = vmatprep.subr.bf16.mxu0 0
    %756 = vmatpush1.bf16.msra.mxu0 0
    %757 = vmatprep.mubr.bf16.mxu0 0
    %758 = vmatmul.mubr.bf16.gmra.mrb[0].mxu0 %v720
    %v759 = vpop.f32.mrb[0].mxu0
    %v760 = vadd.f32 0.0, %v759
    %v761 = vpop.f32.mrb[0].mxu0
    %v762 = vpop.f32.mrb[0].mxu0
    %v763 = vpop.f32.mrb[0].mxu0
    %764 = vdwg.mxu0
    %765 = vrot.lane.b32.xlu0 %v134, 48
    %v766 = vpop.permute.xlu0 %765
    %v768 = vsel %vm138, %v716, 0
    %v771 = vsel %vm277, %v766, 0
    %773 = vmatprep.subr.bf16.mxu0 0
    %774 = vmatpush1.bf16.msra.mxu0 %v771
    %775 = vmatprep.subr.bf16.mxu0 0
    %776 = vmatpush1.bf16.msra.mxu0 0
    %777 = vmatprep.subr.bf16.mxu0 0
    %778 = vmatpush1.bf16.msra.mxu0 0
    %779 = vmatprep.subr.bf16.mxu0 0
    %780 = vmatpush1.bf16.msra.mxu0 0
    %781 = vmatprep.subr.bf16.mxu0 0
    %782 = vmatpush1.bf16.msra.mxu0 0
    %783 = vmatprep.subr.bf16.mxu0 0
    %784 = vmatpush1.bf16.msra.mxu0 0
    %785 = vmatprep.subr.bf16.mxu0 0
    %786 = vmatpush1.bf16.msra.mxu0 0
    %787 = vmatprep.subr.bf16.mxu0 0
    %788 = vmatpush1.bf16.msra.mxu0 0
    %789 = vmatprep.subr.bf16.mxu0 0
    %790 = vmatpush1.bf16.msra.mxu0 0
    %791 = vmatprep.subr.bf16.mxu0 0
    %792 = vmatpush1.bf16.msra.mxu0 0
    %793 = vmatprep.subr.bf16.mxu0 0
    %794 = vmatpush1.bf16.msra.mxu0 0
    %795 = vmatprep.subr.bf16.mxu0 0
    %796 = vmatpush1.bf16.msra.mxu0 0
    %797 = vmatprep.subr.bf16.mxu0 0
    %798 = vmatpush1.bf16.msra.mxu0 0
    %799 = vmatprep.subr.bf16.mxu0 0
    %800 = vmatpush1.bf16.msra.mxu0 0
    %801 = vmatprep.subr.bf16.mxu0 0
    %802 = vmatpush1.bf16.msra.mxu0 0
    %803 = vmatprep.subr.bf16.mxu0 0
    %804 = vmatpush1.bf16.msra.mxu0 0
    %805 = vmatprep.mubr.bf16.mxu0 0
    %806 = vmatmul.mubr.bf16.gmra.mrb[0].mxu0 %v768
    %v807 = vpop.f32.mrb[0].mxu0
    %v808 = vadd.f32 0.0, %v807
    %v809 = vpop.f32.mrb[0].mxu0
    %v810 = vpop.f32.mrb[0].mxu0
    %v811 = vpop.f32.mrb[0].mxu0
    %812 = vdwg.mxu0
    %813 = vrot.lane.b32.xlu0 %v133, 104
    %v814 = vpop.permute.xlu0 %813
    %815 = vrot.lane.b32.xlu0 %v133, 72
    %v816 = vpop.permute.xlu0 %815
    %v818 = vsel %vm138, %v814, 0
    %v821 = vsel %vm138, %v816, 0
    %823 = vmatprep.subr.bf16.mxu0 0
    %824 = vmatpush1.bf16.xpose.msra.mxu0 %v821
    %825 = vmatprep.subr.bf16.mxu0 0
    %826 = vmatpush1.bf16.xpose.msra.mxu0 0
    %827 = vmatprep.subr.bf16.mxu0 0
    %828 = vmatpush1.bf16.xpose.msra.mxu0 0
    %829 = vmatprep.subr.bf16.mxu0 0
    %830 = vmatpush1.bf16.xpose.msra.mxu0 0
    %831 = vmatprep.subr.bf16.mxu0 0
    %832 = vmatpush1.bf16.xpose.msra.mxu0 0
    %833 = vmatprep.subr.bf16.mxu0 0
    %834 = vmatpush1.bf16.xpose.msra.mxu0 0
    %835 = vmatprep.subr.bf16.mxu0 0
    %836 = vmatpush1.bf16.xpose.msra.mxu0 0
    %837 = vmatprep.subr.bf16.mxu0 0
    %838 = vmatpush1.bf16.xpose.msra.mxu0 0
    %839 = vmatprep.subr.bf16.mxu0 0
    %840 = vmatpush1.bf16.xpose.msra.mxu0 0
    %841 = vmatprep.subr.bf16.mxu0 0
    %842 = vmatpush1.bf16.xpose.msra.mxu0 0
    %843 = vmatprep.subr.bf16.mxu0 0
    %844 = vmatpush1.bf16.xpose.msra.mxu0 0
    %845 = vmatprep.subr.bf16.mxu0 0
    %846 = vmatpush1.bf16.xpose.msra.mxu0 0
    %847 = vmatprep.subr.bf16.mxu0 0
    %848 = vmatpush1.bf16.xpose.msra.mxu0 0
    %849 = vmatprep.subr.bf16.mxu0 0
    %850 = vmatpush1.bf16.xpose.msra.mxu0 0
    %851 = vmatprep.subr.bf16.mxu0 0
    %852 = vmatpush1.bf16.xpose.msra.mxu0 0
    %853 = vmatprep.subr.bf16.mxu0 0
    %854 = vmatpush1.bf16.xpose.msra.mxu0 0
    %855 = vmatprep.mubr.bf16.mxu0 0
    %856 = vmatmul.mubr.bf16.gmra.mrb[0].mxu0 %v818
    %v857 = vpop.f32.mrb[0].mxu0
    %v858 = vadd.f32 0.0, %v857
    %v859 = vpop.f32.mrb[0].mxu0
    %v860 = vpop.f32.mrb[0].mxu0
    %v861 = vpop.f32.mrb[0].mxu0
    %862 = vdwg.mxu0
    %863 = vrot.lane.b32.xlu0 %v134, 104
    %v864 = vpop.permute.xlu0 %863
    %865 = vrot.lane.b32.xlu0 %v134, 72
    %v866 = vpop.permute.xlu0 %865
    %v868 = vsel %vm138, %v864, 0
    %v871 = vsel %vm138, %v866, 0
    %873 = vmatprep.subr.bf16.mxu0 0
    %874 = vmatpush1.bf16.xpose.msra.mxu0 %v871
    %875 = vmatprep.subr.bf16.mxu0 0
    %876 = vmatpush1.bf16.xpose.msra.mxu0 0
    %877 = vmatprep.subr.bf16.mxu0 0
    %878 = vmatpush1.bf16.xpose.msra.mxu0 0
    %879 = vmatprep.subr.bf16.mxu0 0
    %880 = vmatpush1.bf16.xpose.msra.mxu0 0
    %881 = vmatprep.subr.bf16.mxu0 0
    %882 = vmatpush1.bf16.xpose.msra.mxu0 0
    %883 = vmatprep.subr.bf16.mxu0 0
    %884 = vmatpush1.bf16.xpose.msra.mxu0 0
    %885 = vmatprep.subr.bf16.mxu0 0
    %886 = vmatpush1.bf16.xpose.msra.mxu0 0
    %887 = vmatprep.subr.bf16.mxu0 0
    %888 = vmatpush1.bf16.xpose.msra.mxu0 0
    %889 = vmatprep.subr.bf16.mxu0 0
    %890 = vmatpush1.bf16.xpose.msra.mxu0 0
    %891 = vmatprep.subr.bf16.mxu0 0
    %892 = vmatpush1.bf16.xpose.msra.mxu0 0
    %893 = vmatprep.subr.bf16.mxu0 0
    %894 = vmatpush1.bf16.xpose.msra.mxu0 0
    %895 = vmatprep.subr.bf16.mxu0 0
    %896 = vmatpush1.bf16.xpose.msra.mxu0 0
    %897 = vmatprep.subr.bf16.mxu0 0
    %898 = vmatpush1.bf16.xpose.msra.mxu0 0
    %899 = vmatprep.subr.bf16.mxu0 0
    %900 = vmatpush1.bf16.xpose.msra.mxu0 0
    %901 = vmatprep.subr.bf16.mxu0 0
    %902 = vmatpush1.bf16.xpose.msra.mxu0 0
    %903 = vmatprep.subr.bf16.mxu0 0
    %904 = vmatpush1.bf16.xpose.msra.mxu0 0
    %905 = vmatprep.mubr.bf16.mxu0 0
    %906 = vmatmul.mubr.bf16.gmra.mrb[0].mxu0 %v868
    %v907 = vpop.f32.mrb[0].mxu0
    %v908 = vadd.f32 0.0, %v907
    %v909 = vpop.f32.mrb[0].mxu0
    %v910 = vpop.f32.mrb[0].mxu0
    %v911 = vpop.f32.mrb[0].mxu0
    %912 = vdwg.mxu0
    %v913 = vsel %vm244, %v858, -1e+30
    %v914 = vsel %vm245, %v908, -1e+30
    %v915 = vsel %vm138, %v913, -inf
    %916 = vmax.xlane.f32.xlu0 %v915
    %v917 = vpop.xlane.xlu0 %916
    %v918 = vsel %vm138, %v914, -inf
    %919 = vmax.xlane.f32.xlu0 %v918
    %v920 = vpop.xlane.xlu0 %919
    %v921 = vsub.f32 %v913, %v917
    %v922 = vsub.f32 %v914, %v920
    %v923 = vmul.f32 %v921, 1.442695
    %v924 = vpow.pop %v923
    %v925 = vmul.f32 %v922, 1.442695
    %v926 = vpow.pop %v925
    %v927 = vsel %vm138, %v924, 0.0
    %928 = vadd.xlane.f32.xlu0 %v927
    %v929 = vpop.xlane.xlu0 %928
    %v930 = vsel %vm138, %v926, 0.0
    %931 = vadd.xlane.f32.xlu0 %v930
    %v932 = vpop.xlane.xlu0 %931
    %v933 = vrcp.pop %v929
    %v934 = vrcp.pop %v932
    %v935 = vmul.f32 %v924, %v933
    %v936 = vmul.f32 %v926, %v934
    %v937 = vpack.c.bf16 %v935, %v935
    %v938 = vpack.c.bf16 %v936, %v936
    %939 = vrot.lane.b32.xlu0 %v133, 40
    %v940 = vpop.permute.xlu0 %939
    %v942 = vsel %vm138, %v937, 0
    %v945 = vsel %vm277, %v940, 0
    %947 = vmatprep.subr.bf16.mxu0 0
    %948 = vmatpush1.bf16.msra.mxu0 %v945
    %949 = vmatprep.subr.bf16.mxu0 0
    %950 = vmatpush1.bf16.msra.mxu0 0
    %951 = vmatprep.subr.bf16.mxu0 0
    %952 = vmatpush1.bf16.msra.mxu0 0
    %953 = vmatprep.subr.bf16.mxu0 0
    %954 = vmatpush1.bf16.msra.mxu0 0
    %955 = vmatprep.subr.bf16.mxu0 0
    %956 = vmatpush1.bf16.msra.mxu0 0
    %957 = vmatprep.subr.bf16.mxu0 0
    %958 = vmatpush1.bf16.msra.mxu0 0
    %959 = vmatprep.subr.bf16.mxu0 0
    %960 = vmatpush1.bf16.msra.mxu0 0
    %961 = vmatprep.subr.bf16.mxu0 0
    %962 = vmatpush1.bf16.msra.mxu0 0
    %963 = vmatprep.subr.bf16.mxu0 0
    %964 = vmatpush1.bf16.msra.mxu0 0
    %965 = vmatprep.subr.bf16.mxu0 0
    %966 = vmatpush1.bf16.msra.mxu0 0
    %967 = vmatprep.subr.bf16.mxu0 0
    %968 = vmatpush1.bf16.msra.mxu0 0
    %969 = vmatprep.subr.bf16.mxu0 0
    %970 = vmatpush1.bf16.msra.mxu0 0
    %971 = vmatprep.subr.bf16.mxu0 0
    %972 = vmatpush1.bf16.msra.mxu0 0
    %973 = vmatprep.subr.bf16.mxu0 0
    %974 = vmatpush1.bf16.msra.mxu0 0
    %975 = vmatprep.subr.bf16.mxu0 0
    %976 = vmatpush1.bf16.msra.mxu0 0
    %977 = vmatprep.subr.bf16.mxu0 0
    %978 = vmatpush1.bf16.msra.mxu0 0
    %979 = vmatprep.mubr.bf16.mxu0 0
    %980 = vmatmul.mubr.bf16.gmra.mrb[0].mxu0 %v942
    %v981 = vpop.f32.mrb[0].mxu0
    %v982 = vadd.f32 0.0, %v981
    %v983 = vpop.f32.mrb[0].mxu0
    %v984 = vpop.f32.mrb[0].mxu0
    %v985 = vpop.f32.mrb[0].mxu0
    %986 = vdwg.mxu0
    %987 = vrot.lane.b32.xlu0 %v134, 40
    %v988 = vpop.permute.xlu0 %987
    %v990 = vsel %vm138, %v938, 0
    %v993 = vsel %vm277, %v988, 0
    %995 = vmatprep.subr.bf16.mxu0 0
    %996 = vmatpush1.bf16.msra.mxu0 %v993
    %997 = vmatprep.subr.bf16.mxu0 0
    %998 = vmatpush1.bf16.msra.mxu0 0
    %999 = vmatprep.subr.bf16.mxu0 0
    %1000 = vmatpush1.bf16.msra.mxu0 0
    %1001 = vmatprep.subr.bf16.mxu0 0
    %1002 = vmatpush1.bf16.msra.mxu0 0
    %1003 = vmatprep.subr.bf16.mxu0 0
    %1004 = vmatpush1.bf16.msra.mxu0 0
    %1005 = vmatprep.subr.bf16.mxu0 0
    %1006 = vmatpush1.bf16.msra.mxu0 0
    %1007 = vmatprep.subr.bf16.mxu0 0
    %1008 = vmatpush1.bf16.msra.mxu0 0
    %1009 = vmatprep.subr.bf16.mxu0 0
    %1010 = vmatpush1.bf16.msra.mxu0 0
    %1011 = vmatprep.subr.bf16.mxu0 0
    %1012 = vmatpush1.bf16.msra.mxu0 0
    %1013 = vmatprep.subr.bf16.mxu0 0
    %1014 = vmatpush1.bf16.msra.mxu0 0
    %1015 = vmatprep.subr.bf16.mxu0 0
    %1016 = vmatpush1.bf16.msra.mxu0 0
    %1017 = vmatprep.subr.bf16.mxu0 0
    %1018 = vmatpush1.bf16.msra.mxu0 0
    %1019 = vmatprep.subr.bf16.mxu0 0
    %1020 = vmatpush1.bf16.msra.mxu0 0
    %1021 = vmatprep.subr.bf16.mxu0 0
    %1022 = vmatpush1.bf16.msra.mxu0 0
    %1023 = vmatprep.subr.bf16.mxu0 0
    %1024 = vmatpush1.bf16.msra.mxu0 0
    %1025 = vmatprep.subr.bf16.mxu0 0
    %1026 = vmatpush1.bf16.msra.mxu0 0
    %1027 = vmatprep.mubr.bf16.mxu0 0
    %1028 = vmatmul.mubr.bf16.gmra.mrb[0].mxu0 %v990
    %v1029 = vpop.f32.mrb[0].mxu0
    %v1030 = vadd.f32 0.0, %v1029
    %v1031 = vpop.f32.mrb[0].mxu0
    %v1032 = vpop.f32.mrb[0].mxu0
    %v1033 = vpop.f32.mrb[0].mxu0
    %1034 = vdwg.mxu0
    %1037 = vrot.lane.b32.xlu0 %v538, 8
    %v1038 = vpop.permute.xlu0 %1037
    %1039 = vrot.lane.b32.xlu0 %v586, 8
    %v1040 = vpop.permute.xlu0 %1039
    %1045 = vrot.lane.b32.xlu0 %v760, 16
    %v1046 = vpop.permute.xlu0 %1045
    %1047 = vrot.lane.b32.xlu0 %v808, 16
    %v1048 = vpop.permute.xlu0 %1047
    %1053 = vrot.lane.b32.xlu0 %v982, 24
    %v1054 = vpop.permute.xlu0 %1053
    %1055 = vrot.lane.b32.xlu0 %v1030, 24
    %v1056 = vpop.permute.xlu0 %1055
    %v1059 = vsel %vm138, %v316, %v1038
    %v1060 = vsel %vm138, %v364, %v1040
    %vm1061 = vcmask 130048
    %v1062 = vsel %vm1061, %v1059, %v1046
    %v1063 = vsel %vm1061, %v1060, %v1048
    %vm1064 = vcmask 195584
    %v1065 = vsel %vm1064, %v1062, %v1054
    %v1066 = vsel %vm1064, %v1063, %v1056
    %v1067 = vpack.c.bf16 %v1066, %v1065
    %v1068 = vld [vmem:[%s3] sm:$0xf]
    %v1069 = vld [vmem:[%s3 + $0x4] sm:$0xf]
    %v1070 = vld [vmem:[%s3 + $0x8] sm:$0xf]
    %v1071 = vld [vmem:[%s3 + $0xc] sm:$0xf]
    %v1076 = vunpack.c.l.b16 %v1068
    %v1077 = vunpack.c.l.b16 %v1069
    %v1078 = vunpack.c.l.b16 %v1070
    %v1079 = vunpack.c.l.b16 %v1071
    %v1080 = vpack.c.b16 %v1077, %v1076
    %v1081 = vpack.c.b16 %v1079, %v1078
    %v1085 = vsel %vm79, %v1067, 0
    %1087 = vmatprep.subr.bf16.mxu0 0
    %1088 = vmatpush1.bf16.msra.mxu0 %v1080
    %1089 = vmatprep.subr.bf16.mxu0 0
    %1090 = vmatpush1.bf16.msra.mxu0 %v1081
    %1091 = vmatprep.subr.bf16.mxu0 0
    %1092 = vmatpush1.bf16.msra.mxu0 0
    %1093 = vmatprep.subr.bf16.mxu0 0
    %1094 = vmatpush1.bf16.msra.mxu0 0
    %1095 = vmatprep.subr.bf16.mxu0 0
    %1096 = vmatpush1.bf16.msra.mxu0 0
    %1097 = vmatprep.subr.bf16.mxu0 0
    %1098 = vmatpush1.bf16.msra.mxu0 0
    %1099 = vmatprep.subr.bf16.mxu0 0
    %1100 = vmatpush1.bf16.msra.mxu0 0
    %1101 = vmatprep.subr.bf16.mxu0 0
    %1102 = vmatpush1.bf16.msra.mxu0 0
    %1103 = vmatprep.subr.bf16.mxu0 0
    %1104 = vmatpush1.bf16.msra.mxu0 0
    %1105 = vmatprep.subr.bf16.mxu0 0
    %1106 = vmatpush1.bf16.msra.mxu0 0
    %1107 = vmatprep.subr.bf16.mxu0 0
    %1108 = vmatpush1.bf16.msra.mxu0 0
    %1109 = vmatprep.subr.bf16.mxu0 0
    %1110 = vmatpush1.bf16.msra.mxu0 0
    %1111 = vmatprep.subr.bf16.mxu0 0
    %1112 = vmatpush1.bf16.msra.mxu0 0
    %1113 = vmatprep.subr.bf16.mxu0 0
    %1114 = vmatpush1.bf16.msra.mxu0 0
    %1115 = vmatprep.subr.bf16.mxu0 0
    %1116 = vmatpush1.bf16.msra.mxu0 0
    %1117 = vmatprep.subr.bf16.mxu0 0
    %1118 = vmatpush1.bf16.msra.mxu0 0
    %1119 = vmatprep.mubr.bf16.mxu0 0
    %1120 = vmatmul.mubr.bf16.gmra.mrb[0].mxu0 %v1085
    %v1121 = vpop.f32.mrb[0].mxu0
    %v1122 = vadd.f32 %v60, %v1121
    %v1123 = vpop.f32.mrb[0].mxu0
    %v1124 = vpop.f32.mrb[0].mxu0
    %v1125 = vadd.f32 %v61, %v1124
    %v1126 = vpop.f32.mrb[0].mxu0
    %1127 = vdwg.mxu0
    %v1128 = vsel %vm79, %v1122, 0.0
    %1129 = vadd.xlane.f32.xlu0 %v1128
    %v1130 = vpop.xlane.xlu0 %1129
    %v1131 = vsel %vm79, %v1125, 0.0
    %1132 = vadd.xlane.f32.xlu0 %v1131
    %v1133 = vpop.xlane.xlu0 %1132
    %v1134 = vrcp.pop 32.0
    %v1135 = vmul.f32 %v1130, %v1134
    %v1136 = vmul.f32 %v1133, %v1134
    %v1137 = vsub.f32 %v1122, %v1135
    %v1138 = vsub.f32 %v1125, %v1136
    %v1139 = vmul.f32 %v1137, %v1137
    %v1140 = vmul.f32 %v1138, %v1138
    %v1141 = vsel %vm79, %v1139, 0.0
    %1142 = vadd.xlane.f32.xlu0 %v1141
    %v1143 = vpop.xlane.xlu0 %1142
    %v1144 = vsel %vm79, %v1140, 0.0
    %1145 = vadd.xlane.f32.xlu0 %v1144
    %v1146 = vpop.xlane.xlu0 %1145
    %v1147 = vmul.f32 %v1143, %v1134
    %v1148 = vmul.f32 %v1146, %v1134
    %v1149 = vadd.f32 %v1147, 1e-05
    %v1150 = vadd.f32 %v1148, 1e-05
    %v1151 = vrsqrt.pop %v1149
    %v1152 = vrsqrt.pop %v1150
    %v1153 = vmul.f32 %v1137, %v1151
    %v1154 = vmul.f32 %v1138, %v1152
    %v1155 = vld [vmem:[%s4] sm:$0x1]
    %v1157 = vlaneseq
    %v1158 = vshrl.u32 %v1157, 7
    %v1159 = vsub.s32 0, %v1158
    %v1160 = vrot.slane %v1155, %v1159
    %v1162 = vmul.f32 %v1153, %v1160
    %v1163 = vmul.f32 %v1154, %v1160
    %v1164 = vld [vmem:[%s5] sm:$0x1]
    %v1166 = vlaneseq
    %v1167 = vshrl.u32 %v1166, 7
    %v1168 = vsub.s32 0, %v1167
    %v1169 = vrot.slane %v1164, %v1168
    %v1171 = vadd.f32 %v1162, %v1169
    %v1172 = vadd.f32 %v1163, %v1169
    %v1173 = vpack.c.bf16 %v1172, %v1171
    %v1174 = vld [vmem:[#allocation4] sm:$0xf]
    %v1175 = vld [vmem:[#allocation4 + $0x4] sm:$0xf]
    %v1176 = vld [vmem:[#allocation4 + $0x8] sm:$0xf]
    %v1177 = vld [vmem:[#allocation4 + $0xc] sm:$0xf]
    %v1178 = vld [vmem:[%s7] sm:$0x1]
    %v1180 = vlaneseq
    %v1181 = vshrl.u32 %v1180, 7
    %v1182 = vsub.s32 0, %v1181
    %v1183 = vrot.slane %v1178, %v1182
    %v1189 = vunpack.c.l.b16 %v1174
    %v1190 = vunpack.c.l.b16 %v1175
    %v1191 = vunpack.c.l.b16 %v1176
    %v1192 = vunpack.c.l.b16 %v1177
    %v1193 = vpack.c.b16 %v1190, %v1189
    %v1194 = vpack.c.b16 %v1192, %v1191
    %v1198 = vsel %vm79, %v1173, 0
    %1200 = vmatprep.subr.bf16.mxu0 0
    %1201 = vmatpush1.bf16.msra.mxu0 %v1193
    %1202 = vmatprep.subr.bf16.mxu0 0
    %1203 = vmatpush1.bf16.msra.mxu0 %v1194
    %1204 = vmatprep.subr.bf16.mxu0 0
    %1205 = vmatpush1.bf16.msra.mxu0 0
    %1206 = vmatprep.subr.bf16.mxu0 0
    %1207 = vmatpush1.bf16.msra.mxu0 0
    %1208 = vmatprep.subr.bf16.mxu0 0
    %1209 = vmatpush1.bf16.msra.mxu0 0
    %1210 = vmatprep.subr.bf16.mxu0 0
    %1211 = vmatpush1.bf16.msra.mxu0 0
    %1212 = vmatprep.subr.bf16.mxu0 0
    %1213 = vmatpush1.bf16.msra.mxu0 0
    %1214 = vmatprep.subr.bf16.mxu0 0
    %1215 = vmatpush1.bf16.msra.mxu0 0
    %1216 = vmatprep.subr.bf16.mxu0 0
    %1217 = vmatpush1.bf16.msra.mxu0 0
    %1218 = vmatprep.subr.bf16.mxu0 0
    %1219 = vmatpush1.bf16.msra.mxu0 0
    %1220 = vmatprep.subr.bf16.mxu0 0
    %1221 = vmatpush1.bf16.msra.mxu0 0
    %1222 = vmatprep.subr.bf16.mxu0 0
    %1223 = vmatpush1.bf16.msra.mxu0 0
    %1224 = vmatprep.subr.bf16.mxu0 0
    %1225 = vmatpush1.bf16.msra.mxu0 0
    %1226 = vmatprep.subr.bf16.mxu0 0
    %1227 = vmatpush1.bf16.msra.mxu0 0
    %1228 = vmatprep.subr.bf16.mxu0 0
    %1229 = vmatpush1.bf16.msra.mxu0 0
    %1230 = vmatprep.subr.bf16.mxu0 0
    %1231 = vmatpush1.bf16.msra.mxu0 0
    %1232 = vmatprep.mubr.bf16.mxu0 0
    %1233 = vmatmul.mubr.bf16.gmra.mrb[0].mxu0 %v1198
    %v1234 = vpop.f32.mrb[0].mxu0
    %v1235 = vadd.f32 %v1183, %v1234
    %v1236 = vpop.f32.mrb[0].mxu0
    %v1237 = vpop.f32.mrb[0].mxu0
    %v1238 = vadd.f32 %v1183, %v1237
    %v1239 = vpop.f32.mrb[0].mxu0
    %1240 = vdwg.mxu0
    %v1241 = vmax.f32 %v1235, 0.0
    %v1242 = vmax.f32 %v1238, 0.0
    %v1243 = vpack.c.bf16 %v1242, %v1241
    %v1244 = vld [vmem:[%s8] sm:$0xf]
    %v1245 = vld [vmem:[%s8 + $0x4] sm:$0xf]
    %v1246 = vld [vmem:[%s8 + $0x8] sm:$0xf]
    %v1247 = vld [vmem:[%s8 + $0xc] sm:$0xf]
    %v1248 = vld [vmem:[%s8 + $0x10] sm:$0xf]
    %v1249 = vld [vmem:[%s8 + $0x14] sm:$0xf]
    %v1250 = vld [vmem:[%s8 + $0x18] sm:$0xf]
    %v1251 = vld [vmem:[%s8 + $0x1c] sm:$0xf]
    %v1252 = vld [vmem:[%s9] sm:$0x1]
    %v1254 = vlaneseq
    %v1255 = vshrl.u32 %v1254, 7
    %v1256 = vsub.s32 0, %v1255
    %v1257 = vrot.slane %v1252, %v1256
    %v1267 = vunpack.c.l.b16 %v1244
    %v1268 = vunpack.c.l.b16 %v1245
    %v1269 = vunpack.c.l.b16 %v1246
    %v1270 = vunpack.c.l.b16 %v1247
    %v1271 = vunpack.c.l.b16 %v1248
    %v1272 = vunpack.c.l.b16 %v1249
    %v1273 = vunpack.c.l.b16 %v1250
    %v1274 = vunpack.c.l.b16 %v1251
    %v1275 = vpack.c.b16 %v1268, %v1267
    %v1276 = vpack.c.b16 %v1270, %v1269
    %v1277 = vpack.c.b16 %v1272, %v1271
    %v1278 = vpack.c.b16 %v1274, %v1273
    %vm1283 = vcmask 523264
    %v1285 = vsel %vm1283, %v1243, 0
    %1287 = vmatprep.subr.bf16.mxu0 0
    %1288 = vmatpush1.bf16.msra.mxu0 %v1275
    %1289 = vmatprep.subr.bf16.mxu0 0
    %1290 = vmatpush1.bf16.msra.mxu0 %v1276
    %1291 = vmatprep.subr.bf16.mxu0 0
    %1292 = vmatpush1.bf16.msra.mxu0 %v1277
    %1293 = vmatprep.subr.bf16.mxu0 0
    %1294 = vmatpush1.bf16.msra.mxu0 %v1278
    %1295 = vmatprep.subr.bf16.mxu0 0
    %1296 = vmatpush1.bf16.msra.mxu0 0
    %1297 = vmatprep.subr.bf16.mxu0 0
    %1298 = vmatpush1.bf16.msra.mxu0 0
    %1299 = vmatprep.subr.bf16.mxu0 0
    %1300 = vmatpush1.bf16.msra.mxu0 0
    %1301 = vmatprep.subr.bf16.mxu0 0
    %1302 = vmatpush1.bf16.msra.mxu0 0
    %1303 = vmatprep.subr.bf16.mxu0 0
    %1304 = vmatpush1.bf16.msra.mxu0 0
    %1305 = vmatprep.subr.bf16.mxu0 0
    %1306 = vmatpush1.bf16.msra.mxu0 0
    %1307 = vmatprep.subr.bf16.mxu0 0
    %1308 = vmatpush1.bf16.msra.mxu0 0
    %1309 = vmatprep.subr.bf16.mxu0 0
    %1310 = vmatpush1.bf16.msra.mxu0 0
    %1311 = vmatprep.subr.bf16.mxu0 0
    %1312 = vmatpush1.bf16.msra.mxu0 0
    %1313 = vmatprep.subr.bf16.mxu0 0
    %1314 = vmatpush1.bf16.msra.mxu0 0
    %1315 = vmatprep.subr.bf16.mxu0 0
    %1316 = vmatpush1.bf16.msra.mxu0 0
    %1317 = vmatprep.subr.bf16.mxu0 0
    %1318 = vmatpush1.bf16.msra.mxu0 0
    %1319 = vmatprep.mubr.bf16.mxu0 0
    %1320 = vmatmul.mubr.bf16.gmra.mrb[0].mxu0 %v1285
    %v1321 = vpop.f32.mrb[0].mxu0
    %v1322 = vadd.f32 %v1257, %v1321
    %v1323 = vpop.f32.mrb[0].mxu0
    %v1324 = vpop.f32.mrb[0].mxu0
    %v1325 = vadd.f32 %v1257, %v1324
    %v1326 = vpop.f32.mrb[0].mxu0
    %1327 = vdwg.mxu0
    %v1328 = vadd.f32 %v1322, %v1171
    %v1329 = vadd.f32 %v1325, %v1172
    %v1330 = vsel %vm79, %v1328, 0.0
    %1331 = vadd.xlane.f32.xlu0 %v1330
    %v1332 = vpop.xlane.xlu0 %1331
    %v1333 = vsel %vm79, %v1329, 0.0
    %1334 = vadd.xlane.f32.xlu0 %v1333
    %v1335 = vpop.xlane.xlu0 %1334
    %v1336 = vmul.f32 %v1332, %v1134
    %v1337 = vmul.f32 %v1335, %v1134
    %v1338 = vsub.f32 %v1328, %v1336
    %v1339 = vsub.f32 %v1329, %v1337
    %v1340 = vmul.f32 %v1338, %v1338
    %v1341 = vmul.f32 %v1339, %v1339
    %v1342 = vsel %vm79, %v1340, 0.0
    %1343 = vadd.xlane.f32.xlu0 %v1342
    %v1344 = vpop.xlane.xlu0 %1343
    %v1345 = vsel %vm79, %v1341, 0.0
    %1346 = vadd.xlane.f32.xlu0 %v1345
    %v1347 = vpop.xlane.xlu0 %1346
    %v1348 = vmul.f32 %v1344, %v1134
    %v1349 = vmul.f32 %v1347, %v1134
    %v1350 = vadd.f32 %v1348, 1e-05
    %v1351 = vadd.f32 %v1349, 1e-05
    %v1352 = vrsqrt.pop %v1350
    %v1353 = vrsqrt.pop %v1351
    %v1354 = vmul.f32 %v1338, %v1352
    %v1355 = vmul.f32 %v1339, %v1353
    %v1356 = vld [vmem:[%s10] sm:$0x1]
    %v1358 = vlaneseq
    %v1359 = vshrl.u32 %v1358, 7
    %v1360 = vsub.s32 0, %v1359
    %v1361 = vrot.slane %v1356, %v1360
    %v1363 = vmul.f32 %v1354, %v1361
    %v1364 = vmul.f32 %v1355, %v1361
    %v1365 = vld [vmem:[%s11] sm:$0x1]
    %v1367 = vlaneseq
    %v1368 = vshrl.u32 %v1367, 7
    %v1369 = vsub.s32 0, %v1368
    %v1370 = vrot.slane %v1365, %v1369
    %v1372 = vadd.f32 %v1363, %v1370
    %v1373 = vadd.f32 %v1364, %v1370
    %1374 = vst.msk [vmem:[#allocation7] sm:$0xff] %vm79, %v1372
    %1375 = vst.msk [vmem:[#allocation7 + $0x8] sm:$0xff] %vm79, %v1373
    // Predicated region
    $region50: #{tpu_custom_call.1} parent=1 // pred_check
      _
    $region51: #{tpu_custom_call.1} parent=1 // pred_check_branch
      %1377 = sbr.rel (0) target = $region53
    $region52: #{tpu_custom_call.1} parent=1 // pred_region
      %s1379 = ssub.s32 256, 256
      %1380 = vsyncadd [#allocation6], %s1379
      %s1381 = sshll.u32 [#allocation7], 4
      %s1382 = int_to_ptr.vmem [resolvable:$true] %s1381
      %1387 = dma.vmem_to_hbm [thread:$0]  %s1382, 256, %s12, [#allocation6], 128, 128, 8
    $region53: #{tpu_custom_call.1} parent=1 // pred_fallthru
      _
    // Predicated region
    $region54: #{tpu_custom_call.1} parent=1 // pred_check
      _
    $region55: #{tpu_custom_call.1} parent=1 // pred_check_branch
      %1389 = sbr.rel (0) target = $region57
    $region56: #{tpu_custom_call.1} parent=1 // pred_region
      %1390 = dma.done [#allocation6], 256
    $region57: #{tpu_custom_call.1} parent=1 // pred_fallthru
      _
    %1391 = vsyncpa [#allocation5], 1
    %1392 = vsyncpa [#allocation6], 1

</llo_original>
